<compile_context>
chip_gen: v5e
topology: v5e:2x2
jax: 0.10.0
libtpu: 0.0.40
codegen_flags: <defaults>
</compile_context>

<pallas_src>
import jax
import jax.numpy as jnp
import numpy as np
from jax.experimental import pallas as pl
from jax.experimental.pallas import tpu as pltpu

EPS_BN = 1e-5
OUT_PAD = 128          # lane-dense padded width of the prediction output
N_LAYER_PARAMS = 9     # params per GIN layer in the flattened list


# ----------------------------- fused forward kernel -----------------------------
def make_fused_kernel(num_layer, N, E):
    def kernel(nf_ref, src_ref, tgt_ref, ea_ref, ext_ref, *refs):
        prm = refs[:-1]
        out_ref = refs[-1]

        nf = nf_ref[0]          # [N, 21]  raw node features
        src = src_ref[0]        # [E, 1]   int32 source node ids
        tgt = tgt_ref[0]        # [1, E]   int32 target node ids
        ea = ea_ref[0]          # [E, 1]   edge attribute
        ext = ext_ref[0]        # [1, ext_dim]

        # --- graph operators built in-kernel (no O(E*N) HBM traffic) ---
        # Se[e, n] = 1 iff src[e] == n   (gather operator)
        Se = (jax.lax.broadcasted_iota(jnp.int32, (E, N), 1) == src).astype(jnp.float32)
        # Tg[n, e] = 1 iff tgt[e] == n   (scatter-add operator)
        Tg = (jax.lax.broadcasted_iota(jnp.int32, (N, E), 0) == tgt).astype(jnp.float32)
        # A[i, j] = number of edges j -> i; gather+scatter is then one [N,N] matmul
        A = jnp.dot(Tg, Se, preferred_element_type=jnp.float32)          # [N, N]
        # layer-invariant pieces of the edge-embedding aggregation:
        #   sum_{e: tgt=i} (ea[e]*wE + bE) = (Tg@ea)[i]*wE + deg[i]*bE
        agg_ea = jnp.dot(Tg, ea, preferred_element_type=jnp.float32)     # [N, 1]
        deg = jnp.sum(Tg, axis=1, keepdims=True)                         # [N, 1]

        # --- layer-0 input embedding: Linear(21, e) ---
        winT = prm[0][...]
        bin_ = prm[1][...]
        h = jnp.dot(nf, winT, preferred_element_type=jnp.float32) + bin_  # [N, e]

        # --- GIN layers ---
        for l in range(num_layer):
            base = 2 + N_LAYER_PARAMS * l
            wEt  = prm[base + 0][...]   # [1, e]
            bE   = prm[base + 1][...]   # [1, e]
            w1aT = prm[base + 2][...]   # [e, 2e]
            w1bT = prm[base + 3][...]   # [e, 2e]
            b1   = prm[base + 4][...]   # [1, 2e]
            g    = prm[base + 5][...]   # [1, 2e]
            beta = prm[base + 6][...]   # [1, 2e]
            w2T  = prm[base + 7][...]   # [2e, e]
            b2   = prm[base + 8][...]   # [1, e]

            # aggregation of gathered neighbours / edge embeddings onto targets
            aggr_x = jnp.dot(A, h, preferred_element_type=jnp.float32)   # [N, e]
            aggr_e = agg_ea * wEt + deg * bE                             # [N, e]
            # mlp Linear(2e,2e) applied to cat([aggr_x, aggr_e]) via split weights
            hh = (jnp.dot(aggr_x, w1aT, preferred_element_type=jnp.float32)
                  + jnp.dot(aggr_e, w1bT, preferred_element_type=jnp.float32)
                  + b1)                                                  # [N, 2e]
            # BatchNorm1d (training-mode batch stats over this graph's N nodes)
            mu = jnp.mean(hh, axis=0, keepdims=True)
            var = jnp.mean((hh - mu) * (hh - mu), axis=0, keepdims=True)
            hn = (hh - mu) * jax.lax.rsqrt(var + EPS_BN) * g + beta
            hr = jnp.maximum(hn, 0.0)
            h = jnp.dot(hr, w2T, preferred_element_type=jnp.float32) + b2  # [N, e]
            if l != num_layer - 1:
                h = jnp.maximum(h, 0.0)   # F.relu; dropout(p=0) is identity

        # --- graph head (per graph) ---
        hd = 2 + N_LAYER_PARAMS * num_layer
        wextT = prm[hd + 0][...]    # [ext_dim, e]
        bext  = prm[hd + 1][...]    # [1, e]
        wpaT  = prm[hd + 2][...]    # [e, OUT_PAD]  (graph_pred_linear, pooled half, padded)
        wpbT  = prm[hd + 3][...]    # [e, OUT_PAD]  (graph_pred_linear, ext half, padded)
        bpred = prm[hd + 4][...]    # [1, OUT_PAD]

        pooled = jnp.mean(h, axis=0, keepdims=True)                        # [1, e]
        ext_emb = jnp.dot(ext, wextT, preferred_element_type=jnp.float32) + bext
        pred = (jnp.dot(pooled, wpaT, preferred_element_type=jnp.float32)
                + jnp.dot(ext_emb, wpbT, preferred_element_type=jnp.float32)
                + bpred)                                                   # [1, OUT_PAD]
        out_ref[0] = pred

    return kernel


# --------------------------- full forward (wrapper) ---------------------------
def gnn_graphpred2_forward(params, node_features, edge_index, edge_attr, ext_x):
    B, N, _ = node_features.shape
    E = edge_index.shape[-1]
    num_layer = len(params["layers"])
    e = params["layers"][0]["w2"].shape[0]
    out_dim = params["head"]["wpred"].shape[0]

    # ---- flatten + pre-transpose / split / pad all parameters (trace-time) ----
    l0 = params["layers"][0]
    flat = [l0["win"].T, l0["bin"].reshape(1, e)]
    for lp in params["layers"]:
        w1 = lp["w1"]
        flat += [lp["wE"].reshape(1, e), lp["bE"],
                 w1[:, :e].T, w1[:, e:].T, lp["b1"],
                 lp["gamma"], lp["beta"],
                 lp["w2"].T, lp["b2"]]
    hp = params["head"]
    wpred = hp["wpred"]                                        # [out_dim, 2e]
    wpaT = jnp.zeros((e, OUT_PAD), jnp.float32).at[:, :out_dim].set(wpred[:, :e].T)
    wpbT = jnp.zeros((e, OUT_PAD), jnp.float32).at[:, :out_dim].set(wpred[:, e:].T)
    bpad = jnp.zeros((1, OUT_PAD), jnp.float32).at[:, :out_dim].set(
        hp["bpred"].reshape(1, out_dim))
    flat += [hp["wext"].T, hp["bext"], wpaT, wpbT, bpad]

    # ---- tiny index / feature re-layouts so the kernel needs no transposes ----
    src_col = edge_index[:, 0, :, None]        # [B, E, 1] int32
    tgt_row = edge_index[:, 1:2, :]            # [B, 1, E] int32
    ext3 = ext_x.reshape(B, 1, -1)             # [B, 1, ext_dim]

    def gspec(shape):
        nd = len(shape)
        return pl.BlockSpec((1,) + tuple(shape[1:]),
                            lambda b, _nd=nd: (b,) + (0,) * (_nd - 1))

    def pspec(arr):
        nd = arr.ndim
        return pl.BlockSpec(arr.shape, lambda b, _nd=nd: (0,) * _nd)

    in_specs = ([gspec(node_features.shape), gspec(src_col.shape),
                 gspec(tgt_row.shape), gspec(edge_attr.shape), gspec(ext3.shape)]
                + [pspec(a) for a in flat])

    kernel = make_fused_kernel(num_layer, N, E)

    padded = pl.pallas_call(
        kernel,
        grid=(B,),
        in_specs=in_specs,
        out_specs=gspec((B, 1, OUT_PAD)),
        out_shape=jax.ShapeDtypeStruct((B, 1, OUT_PAD), jnp.float32),
        compiler_params=pltpu.CompilerParams(dimension_semantics=("parallel",)),
    )(node_features, src_col, tgt_row, edge_attr, ext3, *flat)

    out = padded[:, 0, :out_dim]
    # L1Loss(wpred, zeros, reduction='mean') depends only on parameters -> hoisted
    l1 = jnp.mean(jnp.abs(wpred))
    return out, l1


# ----------------------------- pure-JAX reference ---------------------------
def reference_forward(params, node_features, edge_index, edge_attr, ext_x):
    B, N, _ = node_features.shape
    src, tgt = edge_index[:, 0, :], edge_index[:, 1, :]
    num_layer = len(params["layers"])
    h = node_features
    for l, lp in enumerate(params["layers"]):
        x = (jnp.einsum("bnf,ef->bne", h, lp["win"]) + lp["bin"]) if l == 0 else h
        edge_emb = edge_attr @ lp["wE"].T + lp["bE"]
        outs = []
        for b in range(B):
            x_j = x[b][src[b]]
            msg = jnp.concatenate([x_j, edge_emb[b]], axis=1)
            aggr = jnp.zeros((N, msg.shape[1]), jnp.float32).at[tgt[b]].add(msg)
            hh = aggr @ lp["w1"].T + lp["b1"]
            mu = hh.mean(axis=0, keepdims=True)
            var = ((hh - mu) ** 2).mean(axis=0, keepdims=True)
            hn = (hh - mu) / jnp.sqrt(var + EPS_BN) * lp["gamma"] + lp["beta"]
            outs.append(jnp.maximum(hn, 0.0) @ lp["w2"].T + lp["b2"])
        h = jnp.stack(outs)
        if l != num_layer - 1:
            h = jnp.maximum(h, 0.0)
    pooled = h.mean(axis=1)
    hp = params["head"]
    ext_emb = ext_x @ hp["wext"].T + hp["bext"]
    new_pooled = jnp.concatenate([pooled, ext_emb], axis=1)
    out = new_pooled @ hp["wpred"].T + hp["bpred"]
    return out, jnp.mean(jnp.abs(hp["wpred"]))


# ------------------------------ params (synthetic) ---------------------------
def init_params(key, num_layer, emb_dim, ext_dim, out_dim, node_feat_dim=21):
    e, te = emb_dim, 2 * emb_dim
    keys = iter(jax.random.split(key, 8 * num_layer + 8))

    def lin(shape, scale=0.1):
        return scale * jax.random.normal(next(keys), shape, dtype=jnp.float32)

    layers = []
    for l in range(num_layer):
        lp = {
            "wE": lin((e, 1)), "bE": lin((1, e)),            # edge_encoder
            "w1": lin((te, te)), "b1": lin((1, te)),         # mlp Linear(2e,2e)
            "gamma": jnp.ones((1, te), jnp.float32),         # BatchNorm1d(2e)
            "beta": jnp.zeros((1, te), jnp.float32),
            "w2": lin((e, te)), "b2": lin((1, e)),           # mlp Linear(2e,e)
        }
        if l == 0:
            lp["win"] = lin((e, node_feat_dim))              # input_node_embeddings
            lp["bin"] = lin((e,))
        layers.append(lp)
    head_p = {
        "wext": lin((e, ext_dim)), "bext": lin((1, e)),      # fc_ext
        "wpred": lin((out_dim, te)), "bpred": lin((1, out_dim)),  # graph_pred_linear
    }
    return {"layers": layers, "head": head_p}


if __name__ == "__main__":
    B, N, E = 2, 16, 32
    emb_dim, ext_dim, out_dim, num_layer = 32, 8, 4, 2

    key = jax.random.PRNGKey(0)
    k1, k2, k3, k4, kp = jax.random.split(key, 5)
    node_features = jax.random.normal(k1, (B, N, 21), dtype=jnp.float32)
    edge_index = jax.random.randint(k2, (B, 2, E), 0, N, dtype=jnp.int32)
    edge_attr = jax.random.normal(k3, (B, E, 1), dtype=jnp.float32)
    subject_features = jax.random.normal(k4, (B, ext_dim), dtype=jnp.float32)

    params = init_params(kp, num_layer, emb_dim, ext_dim, out_dim)

    fwd = jax.jit(gnn_graphpred2_forward)
    out, l1 = fwd(params, node_features, edge_index, edge_attr, subject_features)
    jax.block_until_ready((out, l1))

    ref_out, ref_l1 = reference_forward(params, node_features, edge_index,
                                        edge_attr, subject_features)
    np.testing.assert_allclose(np.asarray(out), np.asarray(ref_out),
                               rtol=1e-2, atol=1e-2)
    np.testing.assert_allclose(np.asarray(l1), np.asarray(ref_l1),
                               rtol=1e-2, atol=1e-2)
    print("KERNEL_OK")
</pallas_src>

<mosaic_0001>
module attributes {stable_mosaic.version = 11 : i64} {
  func.func @kernel(%arg0: i32, %arg1: memref<1x16x21xf32, #tpu.memory_space<vmem>>, %arg2: memref<1x32x1xi32, #tpu.memory_space<vmem>>, %arg3: memref<1x1x32xi32, #tpu.memory_space<vmem>>, %arg4: memref<1x32x1xf32, #tpu.memory_space<vmem>>, %arg5: memref<1x1x8xf32, #tpu.memory_space<vmem>>, %arg6: memref<21x32xf32, #tpu.memory_space<vmem>>, %arg7: memref<1x32xf32, #tpu.memory_space<vmem>>, %arg8: memref<1x32xf32, #tpu.memory_space<vmem>>, %arg9: memref<1x32xf32, #tpu.memory_space<vmem>>, %arg10: memref<32x64xf32, #tpu.memory_space<vmem>>, %arg11: memref<32x64xf32, #tpu.memory_space<vmem>>, %arg12: memref<1x64xf32, #tpu.memory_space<vmem>>, %arg13: memref<1x64xf32, #tpu.memory_space<vmem>>, %arg14: memref<1x64xf32, #tpu.memory_space<vmem>>, %arg15: memref<64x32xf32, #tpu.memory_space<vmem>>, %arg16: memref<1x32xf32, #tpu.memory_space<vmem>>, %arg17: memref<1x32xf32, #tpu.memory_space<vmem>>, %arg18: memref<1x32xf32, #tpu.memory_space<vmem>>, %arg19: memref<32x64xf32, #tpu.memory_space<vmem>>, %arg20: memref<32x64xf32, #tpu.memory_space<vmem>>, %arg21: memref<1x64xf32, #tpu.memory_space<vmem>>, %arg22: memref<1x64xf32, #tpu.memory_space<vmem>>, %arg23: memref<1x64xf32, #tpu.memory_space<vmem>>, %arg24: memref<64x32xf32, #tpu.memory_space<vmem>>, %arg25: memref<1x32xf32, #tpu.memory_space<vmem>>, %arg26: memref<8x32xf32, #tpu.memory_space<vmem>>, %arg27: memref<1x32xf32, #tpu.memory_space<vmem>>, %arg28: memref<32x128xf32, #tpu.memory_space<vmem>>, %arg29: memref<32x128xf32, #tpu.memory_space<vmem>>, %arg30: memref<1x128xf32, #tpu.memory_space<vmem>>, %arg31: memref<1x1x128xf32, #tpu.memory_space<vmem>>) attributes {dimension_semantics = [#tpu.dimension_semantics<parallel>], iteration_bounds = array<i64: 2>, scalar_prefetch = 0 : i64, scratch_operands = 0 : i64, tpu.core_type = #tpu.core_type<tc>, window_params = [{transform_indices = @transform_0, window_bounds = array<i64: 1, 16, 21>}, {transform_indices = @transform_1, window_bounds = array<i64: 1, 32, 1>}, {transform_indices = @transform_2, window_bounds = array<i64: 1, 1, 32>}, {transform_indices = @transform_3, window_bounds = array<i64: 1, 32, 1>}, {transform_indices = @transform_4, window_bounds = array<i64: 1, 1, 8>}, {pipeline_mode = #tpu.pipeline_mode<synchronous>, transform_indices = @transform_5, window_bounds = array<i64: 21, 32>}, {pipeline_mode = #tpu.pipeline_mode<synchronous>, transform_indices = @transform_6, window_bounds = array<i64: 1, 32>}, {pipeline_mode = #tpu.pipeline_mode<synchronous>, transform_indices = @transform_7, window_bounds = array<i64: 1, 32>}, {pipeline_mode = #tpu.pipeline_mode<synchronous>, transform_indices = @transform_8, window_bounds = array<i64: 1, 32>}, {pipeline_mode = #tpu.pipeline_mode<synchronous>, transform_indices = @transform_9, window_bounds = array<i64: 32, 64>}, {pipeline_mode = #tpu.pipeline_mode<synchronous>, transform_indices = @transform_10, window_bounds = array<i64: 32, 64>}, {pipeline_mode = #tpu.pipeline_mode<synchronous>, transform_indices = @transform_11, window_bounds = array<i64: 1, 64>}, {pipeline_mode = #tpu.pipeline_mode<synchronous>, transform_indices = @transform_12, window_bounds = array<i64: 1, 64>}, {pipeline_mode = #tpu.pipeline_mode<synchronous>, transform_indices = @transform_13, window_bounds = array<i64: 1, 64>}, {pipeline_mode = #tpu.pipeline_mode<synchronous>, transform_indices = @transform_14, window_bounds = array<i64: 64, 32>}, {pipeline_mode = #tpu.pipeline_mode<synchronous>, transform_indices = @transform_15, window_bounds = array<i64: 1, 32>}, {pipeline_mode = #tpu.pipeline_mode<synchronous>, transform_indices = @transform_16, window_bounds = array<i64: 1, 32>}, {pipeline_mode = #tpu.pipeline_mode<synchronous>, transform_indices = @transform_17, window_bounds = array<i64: 1, 32>}, {pipeline_mode = #tpu.pipeline_mode<synchronous>, transform_indices = @transform_18, window_bounds = array<i64: 32, 64>}, {pipeline_mode = #tpu.pipeline_mode<synchronous>, transform_indices = @transform_19, window_bounds = array<i64: 32, 64>}, {pipeline_mode = #tpu.pipeline_mode<synchronous>, transform_indices = @transform_20, window_bounds = array<i64: 1, 64>}, {pipeline_mode = #tpu.pipeline_mode<synchronous>, transform_indices = @transform_21, window_bounds = array<i64: 1, 64>}, {pipeline_mode = #tpu.pipeline_mode<synchronous>, transform_indices = @transform_22, window_bounds = array<i64: 1, 64>}, {pipeline_mode = #tpu.pipeline_mode<synchronous>, transform_indices = @transform_23, window_bounds = array<i64: 64, 32>}, {pipeline_mode = #tpu.pipeline_mode<synchronous>, transform_indices = @transform_24, window_bounds = array<i64: 1, 32>}, {pipeline_mode = #tpu.pipeline_mode<synchronous>, transform_indices = @transform_25, window_bounds = array<i64: 8, 32>}, {pipeline_mode = #tpu.pipeline_mode<synchronous>, transform_indices = @transform_26, window_bounds = array<i64: 1, 32>}, {pipeline_mode = #tpu.pipeline_mode<synchronous>, transform_indices = @transform_27, window_bounds = array<i64: 32, 128>}, {pipeline_mode = #tpu.pipeline_mode<synchronous>, transform_indices = @transform_28, window_bounds = array<i64: 32, 128>}, {pipeline_mode = #tpu.pipeline_mode<synchronous>, transform_indices = @transform_29, window_bounds = array<i64: 1, 128>}, {transform_indices = @transform_30, window_bounds = array<i64: 1, 1, 128>}]} {
    %c0 = arith.constant 0 : index
    %c0_0 = arith.constant 0 : index
    %c0_1 = arith.constant 0 : index
    %0 = vector.load %arg1[%c0, %c0_0, %c0_1] : memref<1x16x21xf32, #tpu.memory_space<vmem>>, vector<1x16x21xf32>
    %1 = vector.shape_cast %0 : vector<1x16x21xf32> to vector<16x21xf32>
    %c0_2 = arith.constant 0 : index
    %c0_3 = arith.constant 0 : index
    %c0_4 = arith.constant 0 : index
    %2 = vector.load %arg2[%c0_2, %c0_3, %c0_4] : memref<1x32x1xi32, #tpu.memory_space<vmem>>, vector<1x32x1xi32>
    %3 = vector.shape_cast %2 : vector<1x32x1xi32> to vector<32x1xi32>
    %c0_5 = arith.constant 0 : index
    %c0_6 = arith.constant 0 : index
    %c0_7 = arith.constant 0 : index
    %4 = vector.load %arg3[%c0_5, %c0_6, %c0_7] : memref<1x1x32xi32, #tpu.memory_space<vmem>>, vector<1x1x32xi32>
    %5 = vector.shape_cast %4 : vector<1x1x32xi32> to vector<1x32xi32>
    %c0_8 = arith.constant 0 : index
    %c0_9 = arith.constant 0 : index
    %c0_10 = arith.constant 0 : index
    %6 = vector.load %arg4[%c0_8, %c0_9, %c0_10] : memref<1x32x1xf32, #tpu.memory_space<vmem>>, vector<1x32x1xf32>
    %7 = vector.shape_cast %6 : vector<1x32x1xf32> to vector<32x1xf32>
    %c0_11 = arith.constant 0 : index
    %c0_12 = arith.constant 0 : index
    %c0_13 = arith.constant 0 : index
    %8 = vector.load %arg5[%c0_11, %c0_12, %c0_13] : memref<1x1x8xf32, #tpu.memory_space<vmem>>, vector<1x1x8xf32>
    %9 = vector.shape_cast %8 : vector<1x1x8xf32> to vector<1x8xf32>
    %10 = tpu.iota {dimensions = array<i32: 1>} : vector<32x16xi32>
    %11 = vector.broadcast %3 : vector<32x1xi32> to vector<32x16xi32>
    %12 = arith.cmpi eq, %10, %11 : vector<32x16xi32>
    %13 = arith.extui %12 : vector<32x16xi1> to vector<32x16xi32>
    %14 = arith.sitofp %13 : vector<32x16xi32> to vector<32x16xf32>
    %15 = tpu.iota {dimensions = array<i32: 0>} : vector<16x32xi32>
    %16 = vector.broadcast %5 : vector<1x32xi32> to vector<16x32xi32>
    %17 = arith.cmpi eq, %15, %16 : vector<16x32xi32>
    %18 = arith.extui %17 : vector<16x32xi1> to vector<16x32xi32>
    %19 = arith.sitofp %18 : vector<16x32xi32> to vector<16x32xf32>
    %cst = arith.constant dense<0.000000e+00> : vector<16x16xf32>
    %20 = tpu.matmul %19, %14, %cst {dimension_numbers = #tpu.dot_dimension_numbers<[1], [0], [0], [1], [0, 0, 1, 1], [], []>} : vector<16x32xf32>, vector<32x16xf32>, vector<16x16xf32> -> vector<16x16xf32>
    %cst_14 = arith.constant dense<0.000000e+00> : vector<16x1xf32>
    %21 = tpu.matmul %19, %7, %cst_14 {dimension_numbers = #tpu.dot_dimension_numbers<[1], [0], [0], [1], [0, 0, 1, 1], [], []>} : vector<16x32xf32>, vector<32x1xf32>, vector<16x1xf32> -> vector<16x1xf32>
    %cst_15 = arith.constant dense<0.000000e+00> : vector<16xf32>
    %22 = vector.multi_reduction <add>, %19, %cst_15 [1] : vector<16x32xf32> to vector<16xf32>
    %23 = vector.shape_cast %22 : vector<16xf32> to vector<16x1xf32>
    %c0_16 = arith.constant 0 : index
    %c0_17 = arith.constant 0 : index
    %24 = vector.load %arg6[%c0_16, %c0_17] : memref<21x32xf32, #tpu.memory_space<vmem>>, vector<21x32xf32>
    %c0_18 = arith.constant 0 : index
    %c0_19 = arith.constant 0 : index
    %25 = vector.load %arg7[%c0_18, %c0_19] : memref<1x32xf32, #tpu.memory_space<vmem>>, vector<1x32xf32>
    %cst_20 = arith.constant dense<0.000000e+00> : vector<16x32xf32>
    %26 = tpu.matmul %1, %24, %cst_20 {dimension_numbers = #tpu.dot_dimension_numbers<[1], [0], [0], [1], [0, 0, 1, 1], [], []>} : vector<16x21xf32>, vector<21x32xf32>, vector<16x32xf32> -> vector<16x32xf32>
    %27 = vector.broadcast %25 : vector<1x32xf32> to vector<16x32xf32>
    %28 = arith.addf %26, %27 : vector<16x32xf32>
    %c0_21 = arith.constant 0 : index
    %c0_22 = arith.constant 0 : index
    %29 = vector.load %arg8[%c0_21, %c0_22] : memref<1x32xf32, #tpu.memory_space<vmem>>, vector<1x32xf32>
    %c0_23 = arith.constant 0 : index
    %c0_24 = arith.constant 0 : index
    %30 = vector.load %arg9[%c0_23, %c0_24] : memref<1x32xf32, #tpu.memory_space<vmem>>, vector<1x32xf32>
    %c0_25 = arith.constant 0 : index
    %c0_26 = arith.constant 0 : index
    %31 = vector.load %arg10[%c0_25, %c0_26] : memref<32x64xf32, #tpu.memory_space<vmem>>, vector<32x64xf32>
    %c0_27 = arith.constant 0 : index
    %c0_28 = arith.constant 0 : index
    %32 = vector.load %arg11[%c0_27, %c0_28] : memref<32x64xf32, #tpu.memory_space<vmem>>, vector<32x64xf32>
    %c0_29 = arith.constant 0 : index
    %c0_30 = arith.constant 0 : index
    %33 = vector.load %arg12[%c0_29, %c0_30] : memref<1x64xf32, #tpu.memory_space<vmem>>, vector<1x64xf32>
    %c0_31 = arith.constant 0 : index
    %c0_32 = arith.constant 0 : index
    %34 = vector.load %arg13[%c0_31, %c0_32] : memref<1x64xf32, #tpu.memory_space<vmem>>, vector<1x64xf32>
    %c0_33 = arith.constant 0 : index
    %c0_34 = arith.constant 0 : index
    %35 = vector.load %arg14[%c0_33, %c0_34] : memref<1x64xf32, #tpu.memory_space<vmem>>, vector<1x64xf32>
    %c0_35 = arith.constant 0 : index
    %c0_36 = arith.constant 0 : index
    %36 = vector.load %arg15[%c0_35, %c0_36] : memref<64x32xf32, #tpu.memory_space<vmem>>, vector<64x32xf32>
    %c0_37 = arith.constant 0 : index
    %c0_38 = arith.constant 0 : index
    %37 = vector.load %arg16[%c0_37, %c0_38] : memref<1x32xf32, #tpu.memory_space<vmem>>, vector<1x32xf32>
    %cst_39 = arith.constant dense<0.000000e+00> : vector<16x32xf32>
    %38 = tpu.matmul %20, %28, %cst_39 {dimension_numbers = #tpu.dot_dimension_numbers<[1], [0], [0], [1], [0, 0, 1, 1], [], []>} : vector<16x16xf32>, vector<16x32xf32>, vector<16x32xf32> -> vector<16x32xf32>
    %39 = vector.broadcast %21 : vector<16x1xf32> to vector<16x32xf32>
    %40 = vector.broadcast %29 : vector<1x32xf32> to vector<16x32xf32>
    %41 = arith.mulf %39, %40 : vector<16x32xf32>
    %42 = vector.broadcast %23 : vector<16x1xf32> to vector<16x32xf32>
    %43 = vector.broadcast %30 : vector<1x32xf32> to vector<16x32xf32>
    %44 = arith.mulf %42, %43 : vector<16x32xf32>
    %45 = arith.addf %41, %44 : vector<16x32xf32>
    %cst_40 = arith.constant dense<0.000000e+00> : vector<16x64xf32>
    %46 = tpu.matmul %38, %31, %cst_40 {dimension_numbers = #tpu.dot_dimension_numbers<[1], [0], [0], [1], [0, 0, 1, 1], [], []>} : vector<16x32xf32>, vector<32x64xf32>, vector<16x64xf32> -> vector<16x64xf32>
    %cst_41 = arith.constant dense<0.000000e+00> : vector<16x64xf32>
    %47 = tpu.matmul %45, %32, %cst_41 {dimension_numbers = #tpu.dot_dimension_numbers<[1], [0], [0], [1], [0, 0, 1, 1], [], []>} : vector<16x32xf32>, vector<32x64xf32>, vector<16x64xf32> -> vector<16x64xf32>
    %48 = arith.addf %46, %47 : vector<16x64xf32>
    %49 = vector.broadcast %33 : vector<1x64xf32> to vector<16x64xf32>
    %50 = arith.addf %48, %49 : vector<16x64xf32>
    %cst_42 = arith.constant dense<0.000000e+00> : vector<64xf32>
    %51 = vector.multi_reduction <add>, %50, %cst_42 [0] : vector<16x64xf32> to vector<64xf32>
    %52 = vector.shape_cast %51 : vector<64xf32> to vector<1x64xf32>
    %cst_43 = arith.constant 1.600000e+01 : f32
    %53 = vector.broadcast %cst_43 : f32 to vector<1x64xf32>
    %54 = arith.divf %52, %53 : vector<1x64xf32>
    %55 = vector.broadcast %54 : vector<1x64xf32> to vector<16x64xf32>
    %56 = arith.subf %50, %55 : vector<16x64xf32>
    %57 = vector.broadcast %54 : vector<1x64xf32> to vector<16x64xf32>
    %58 = arith.subf %50, %57 : vector<16x64xf32>
    %59 = arith.mulf %56, %58 : vector<16x64xf32>
    %cst_44 = arith.constant dense<0.000000e+00> : vector<64xf32>
    %60 = vector.multi_reduction <add>, %59, %cst_44 [0] : vector<16x64xf32> to vector<64xf32>
    %61 = vector.shape_cast %60 : vector<64xf32> to vector<1x64xf32>
    %cst_45 = arith.constant 1.600000e+01 : f32
    %62 = vector.broadcast %cst_45 : f32 to vector<1x64xf32>
    %63 = arith.divf %61, %62 : vector<1x64xf32>
    %64 = vector.broadcast %54 : vector<1x64xf32> to vector<16x64xf32>
    %65 = arith.subf %50, %64 : vector<16x64xf32>
    %cst_46 = arith.constant 9.99999974E-6 : f32
    %66 = vector.broadcast %cst_46 : f32 to vector<1x64xf32>
    %67 = arith.addf %63, %66 : vector<1x64xf32>
    %68 = math.rsqrt %67 : vector<1x64xf32>
    %69 = vector.broadcast %68 : vector<1x64xf32> to vector<16x64xf32>
    %70 = arith.mulf %65, %69 : vector<16x64xf32>
    %71 = vector.broadcast %34 : vector<1x64xf32> to vector<16x64xf32>
    %72 = arith.mulf %70, %71 : vector<16x64xf32>
    %73 = vector.broadcast %35 : vector<1x64xf32> to vector<16x64xf32>
    %74 = arith.addf %72, %73 : vector<16x64xf32>
    %cst_47 = arith.constant 0.000000e+00 : f32
    %75 = vector.broadcast %cst_47 : f32 to vector<16x64xf32>
    %76 = arith.maximumf %74, %75 : vector<16x64xf32>
    %cst_48 = arith.constant dense<0.000000e+00> : vector<16x32xf32>
    %77 = tpu.matmul %76, %36, %cst_48 {dimension_numbers = #tpu.dot_dimension_numbers<[1], [0], [0], [1], [0, 0, 1, 1], [], []>} : vector<16x64xf32>, vector<64x32xf32>, vector<16x32xf32> -> vector<16x32xf32>
    %78 = vector.broadcast %37 : vector<1x32xf32> to vector<16x32xf32>
    %79 = arith.addf %77, %78 : vector<16x32xf32>
    %cst_49 = arith.constant 0.000000e+00 : f32
    %80 = vector.broadcast %cst_49 : f32 to vector<16x32xf32>
    %81 = arith.maximumf %79, %80 : vector<16x32xf32>
    %c0_50 = arith.constant 0 : index
    %c0_51 = arith.constant 0 : index
    %82 = vector.load %arg17[%c0_50, %c0_51] : memref<1x32xf32, #tpu.memory_space<vmem>>, vector<1x32xf32>
    %c0_52 = arith.constant 0 : index
    %c0_53 = arith.constant 0 : index
    %83 = vector.load %arg18[%c0_52, %c0_53] : memref<1x32xf32, #tpu.memory_space<vmem>>, vector<1x32xf32>
    %c0_54 = arith.constant 0 : index
    %c0_55 = arith.constant 0 : index
    %84 = vector.load %arg19[%c0_54, %c0_55] : memref<32x64xf32, #tpu.memory_space<vmem>>, vector<32x64xf32>
    %c0_56 = arith.constant 0 : index
    %c0_57 = arith.constant 0 : index
    %85 = vector.load %arg20[%c0_56, %c0_57] : memref<32x64xf32, #tpu.memory_space<vmem>>, vector<32x64xf32>
    %c0_58 = arith.constant 0 : index
    %c0_59 = arith.constant 0 : index
    %86 = vector.load %arg21[%c0_58, %c0_59] : memref<1x64xf32, #tpu.memory_space<vmem>>, vector<1x64xf32>
    %c0_60 = arith.constant 0 : index
    %c0_61 = arith.constant 0 : index
    %87 = vector.load %arg22[%c0_60, %c0_61] : memref<1x64xf32, #tpu.memory_space<vmem>>, vector<1x64xf32>
    %c0_62 = arith.constant 0 : index
    %c0_63 = arith.constant 0 : index
    %88 = vector.load %arg23[%c0_62, %c0_63] : memref<1x64xf32, #tpu.memory_space<vmem>>, vector<1x64xf32>
    %c0_64 = arith.constant 0 : index
    %c0_65 = arith.constant 0 : index
    %89 = vector.load %arg24[%c0_64, %c0_65] : memref<64x32xf32, #tpu.memory_space<vmem>>, vector<64x32xf32>
    %c0_66 = arith.constant 0 : index
    %c0_67 = arith.constant 0 : index
    %90 = vector.load %arg25[%c0_66, %c0_67] : memref<1x32xf32, #tpu.memory_space<vmem>>, vector<1x32xf32>
    %cst_68 = arith.constant dense<0.000000e+00> : vector<16x32xf32>
    %91 = tpu.matmul %20, %81, %cst_68 {dimension_numbers = #tpu.dot_dimension_numbers<[1], [0], [0], [1], [0, 0, 1, 1], [], []>} : vector<16x16xf32>, vector<16x32xf32>, vector<16x32xf32> -> vector<16x32xf32>
    %92 = vector.broadcast %21 : vector<16x1xf32> to vector<16x32xf32>
    %93 = vector.broadcast %82 : vector<1x32xf32> to vector<16x32xf32>
    %94 = arith.mulf %92, %93 : vector<16x32xf32>
    %95 = vector.broadcast %23 : vector<16x1xf32> to vector<16x32xf32>
    %96 = vector.broadcast %83 : vector<1x32xf32> to vector<16x32xf32>
    %97 = arith.mulf %95, %96 : vector<16x32xf32>
    %98 = arith.addf %94, %97 : vector<16x32xf32>
    %cst_69 = arith.constant dense<0.000000e+00> : vector<16x64xf32>
    %99 = tpu.matmul %91, %84, %cst_69 {dimension_numbers = #tpu.dot_dimension_numbers<[1], [0], [0], [1], [0, 0, 1, 1], [], []>} : vector<16x32xf32>, vector<32x64xf32>, vector<16x64xf32> -> vector<16x64xf32>
    %cst_70 = arith.constant dense<0.000000e+00> : vector<16x64xf32>
    %100 = tpu.matmul %98, %85, %cst_70 {dimension_numbers = #tpu.dot_dimension_numbers<[1], [0], [0], [1], [0, 0, 1, 1], [], []>} : vector<16x32xf32>, vector<32x64xf32>, vector<16x64xf32> -> vector<16x64xf32>
    %101 = arith.addf %99, %100 : vector<16x64xf32>
    %102 = vector.broadcast %86 : vector<1x64xf32> to vector<16x64xf32>
    %103 = arith.addf %101, %102 : vector<16x64xf32>
    %cst_71 = arith.constant dense<0.000000e+00> : vector<64xf32>
    %104 = vector.multi_reduction <add>, %103, %cst_71 [0] : vector<16x64xf32> to vector<64xf32>
    %105 = vector.shape_cast %104 : vector<64xf32> to vector<1x64xf32>
    %cst_72 = arith.constant 1.600000e+01 : f32
    %106 = vector.broadcast %cst_72 : f32 to vector<1x64xf32>
    %107 = arith.divf %105, %106 : vector<1x64xf32>
    %108 = vector.broadcast %107 : vector<1x64xf32> to vector<16x64xf32>
    %109 = arith.subf %103, %108 : vector<16x64xf32>
    %110 = vector.broadcast %107 : vector<1x64xf32> to vector<16x64xf32>
    %111 = arith.subf %103, %110 : vector<16x64xf32>
    %112 = arith.mulf %109, %111 : vector<16x64xf32>
    %cst_73 = arith.constant dense<0.000000e+00> : vector<64xf32>
    %113 = vector.multi_reduction <add>, %112, %cst_73 [0] : vector<16x64xf32> to vector<64xf32>
    %114 = vector.shape_cast %113 : vector<64xf32> to vector<1x64xf32>
    %cst_74 = arith.constant 1.600000e+01 : f32
    %115 = vector.broadcast %cst_74 : f32 to vector<1x64xf32>
    %116 = arith.divf %114, %115 : vector<1x64xf32>
    %117 = vector.broadcast %107 : vector<1x64xf32> to vector<16x64xf32>
    %118 = arith.subf %103, %117 : vector<16x64xf32>
    %cst_75 = arith.constant 9.99999974E-6 : f32
    %119 = vector.broadcast %cst_75 : f32 to vector<1x64xf32>
    %120 = arith.addf %116, %119 : vector<1x64xf32>
    %121 = math.rsqrt %120 : vector<1x64xf32>
    %122 = vector.broadcast %121 : vector<1x64xf32> to vector<16x64xf32>
    %123 = arith.mulf %118, %122 : vector<16x64xf32>
    %124 = vector.broadcast %87 : vector<1x64xf32> to vector<16x64xf32>
    %125 = arith.mulf %123, %124 : vector<16x64xf32>
    %126 = vector.broadcast %88 : vector<1x64xf32> to vector<16x64xf32>
    %127 = arith.addf %125, %126 : vector<16x64xf32>
    %cst_76 = arith.constant 0.000000e+00 : f32
    %128 = vector.broadcast %cst_76 : f32 to vector<16x64xf32>
    %129 = arith.maximumf %127, %128 : vector<16x64xf32>
    %cst_77 = arith.constant dense<0.000000e+00> : vector<16x32xf32>
    %130 = tpu.matmul %129, %89, %cst_77 {dimension_numbers = #tpu.dot_dimension_numbers<[1], [0], [0], [1], [0, 0, 1, 1], [], []>} : vector<16x64xf32>, vector<64x32xf32>, vector<16x32xf32> -> vector<16x32xf32>
    %131 = vector.broadcast %90 : vector<1x32xf32> to vector<16x32xf32>
    %132 = arith.addf %130, %131 : vector<16x32xf32>
    %c0_78 = arith.constant 0 : index
    %c0_79 = arith.constant 0 : index
    %133 = vector.load %arg26[%c0_78, %c0_79] : memref<8x32xf32, #tpu.memory_space<vmem>>, vector<8x32xf32>
    %c0_80 = arith.constant 0 : index
    %c0_81 = arith.constant 0 : index
    %134 = vector.load %arg27[%c0_80, %c0_81] : memref<1x32xf32, #tpu.memory_space<vmem>>, vector<1x32xf32>
    %c0_82 = arith.constant 0 : index
    %c0_83 = arith.constant 0 : index
    %135 = vector.load %arg28[%c0_82, %c0_83] : memref<32x128xf32, #tpu.memory_space<vmem>>, vector<32x128xf32>
    %c0_84 = arith.constant 0 : index
    %c0_85 = arith.constant 0 : index
    %136 = vector.load %arg29[%c0_84, %c0_85] : memref<32x128xf32, #tpu.memory_space<vmem>>, vector<32x128xf32>
    %c0_86 = arith.constant 0 : index
    %c0_87 = arith.constant 0 : index
    %137 = vector.load %arg30[%c0_86, %c0_87] : memref<1x128xf32, #tpu.memory_space<vmem>>, vector<1x128xf32>
    %cst_88 = arith.constant dense<0.000000e+00> : vector<32xf32>
    %138 = vector.multi_reduction <add>, %132, %cst_88 [0] : vector<16x32xf32> to vector<32xf32>
    %139 = vector.shape_cast %138 : vector<32xf32> to vector<1x32xf32>
    %cst_89 = arith.constant 1.600000e+01 : f32
    %140 = vector.broadcast %cst_89 : f32 to vector<1x32xf32>
    %141 = arith.divf %139, %140 : vector<1x32xf32>
    %cst_90 = arith.constant dense<0.000000e+00> : vector<1x32xf32>
    %142 = tpu.matmul %9, %133, %cst_90 {dimension_numbers = #tpu.dot_dimension_numbers<[1], [0], [0], [1], [0, 0, 1, 1], [], []>} : vector<1x8xf32>, vector<8x32xf32>, vector<1x32xf32> -> vector<1x32xf32>
    %143 = arith.addf %142, %134 : vector<1x32xf32>
    %cst_91 = arith.constant dense<0.000000e+00> : vector<1x128xf32>
    %144 = tpu.matmul %141, %135, %cst_91 {dimension_numbers = #tpu.dot_dimension_numbers<[1], [0], [0], [1], [0, 0, 1, 1], [], []>} : vector<1x32xf32>, vector<32x128xf32>, vector<1x128xf32> -> vector<1x128xf32>
    %cst_92 = arith.constant dense<0.000000e+00> : vector<1x128xf32>
    %145 = tpu.matmul %143, %136, %cst_92 {dimension_numbers = #tpu.dot_dimension_numbers<[1], [0], [0], [1], [0, 0, 1, 1], [], []>} : vector<1x32xf32>, vector<32x128xf32>, vector<1x128xf32> -> vector<1x128xf32>
    %146 = arith.addf %144, %145 : vector<1x128xf32>
    %147 = arith.addf %146, %137 : vector<1x128xf32>
    %c0_93 = arith.constant 0 : index
    %c0_94 = arith.constant 0 : index
    %c0_95 = arith.constant 0 : index
    %148 = vector.load %arg31[%c0_93, %c0_94, %c0_95] : memref<1x1x128xf32, #tpu.memory_space<vmem>>, vector<1x1x128xf32>
    %149 = vector.shape_cast %148 : vector<1x1x128xf32> to vector<1x128xf32>
    %150 = vector.shape_cast %147 : vector<1x128xf32> to vector<1x1x128xf32>
    tpu.vector_store %arg31[%c0_93, %c0_94, %c0_95], %150 {strides = array<i32>} : memref<1x1x128xf32, #tpu.memory_space<vmem>>, vector<1x1x128xf32>,
    return
  }
  func.func @transform_0(%arg0: i32) -> (i32, i32, i32) {
    %c0_i32 = arith.constant 0 : i32
    %c0_i32_0 = arith.constant 0 : i32
    %c0_i32_1 = arith.constant 0 : i32
    return %arg0, %c0_i32, %c0_i32_0 : i32, i32, i32
  }
  func.func @transform_1(%arg0: i32) -> (i32, i32, i32) {
    %c0_i32 = arith.constant 0 : i32
    %c0_i32_0 = arith.constant 0 : i32
    %c0_i32_1 = arith.constant 0 : i32
    return %arg0, %c0_i32, %c0_i32_0 : i32, i32, i32
  }
  func.func @transform_2(%arg0: i32) -> (i32, i32, i32) {
    %c0_i32 = arith.constant 0 : i32
    %c0_i32_0 = arith.constant 0 : i32
    %c0_i32_1 = arith.constant 0 : i32
    return %arg0, %c0_i32, %c0_i32_0 : i32, i32, i32
  }
  func.func @transform_3(%arg0: i32) -> (i32, i32, i32) {
    %c0_i32 = arith.constant 0 : i32
    %c0_i32_0 = arith.constant 0 : i32
    %c0_i32_1 = arith.constant 0 : i32
    return %arg0, %c0_i32, %c0_i32_0 : i32, i32, i32
  }
  func.func @transform_4(%arg0: i32) -> (i32, i32, i32) {
    %c0_i32 = arith.constant 0 : i32
    %c0_i32_0 = arith.constant 0 : i32
    %c0_i32_1 = arith.constant 0 : i32
    return %arg0, %c0_i32, %c0_i32_0 : i32, i32, i32
  }
  func.func @transform_5(%arg0: i32) -> (i32, i32) {
    %c0_i32 = arith.constant 0 : i32
    %c0_i32_0 = arith.constant 0 : i32
    %c0_i32_1 = arith.constant 0 : i32
    return %c0_i32, %c0_i32_0 : i32, i32
  }
  func.func @transform_6(%arg0: i32) -> (i32, i32) {
    %c0_i32 = arith.constant 0 : i32
    %c0_i32_0 = arith.constant 0 : i32
    %c0_i32_1 = arith.constant 0 : i32
    return %c0_i32, %c0_i32_0 : i32, i32
  }
  func.func @transform_7(%arg0: i32) -> (i32, i32) {
    %c0_i32 = arith.constant 0 : i32
    %c0_i32_0 = arith.constant 0 : i32
    %c0_i32_1 = arith.constant 0 : i32
    return %c0_i32, %c0_i32_0 : i32, i32
  }
  func.func @transform_8(%arg0: i32) -> (i32, i32) {
    %c0_i32 = arith.constant 0 : i32
    %c0_i32_0 = arith.constant 0 : i32
    %c0_i32_1 = arith.constant 0 : i32
    return %c0_i32, %c0_i32_0 : i32, i32
  }
  func.func @transform_9(%arg0: i32) -> (i32, i32) {
    %c0_i32 = arith.constant 0 : i32
    %c0_i32_0 = arith.constant 0 : i32
    %c0_i32_1 = arith.constant 0 : i32
    return %c0_i32, %c0_i32_0 : i32, i32
  }
  func.func @transform_10(%arg0: i32) -> (i32, i32) {
    %c0_i32 = arith.constant 0 : i32
    %c0_i32_0 = arith.constant 0 : i32
    %c0_i32_1 = arith.constant 0 : i32
    return %c0_i32, %c0_i32_0 : i32, i32
  }
  func.func @transform_11(%arg0: i32) -> (i32, i32) {
    %c0_i32 = arith.constant 0 : i32
    %c0_i32_0 = arith.constant 0 : i32
    %c0_i32_1 = arith.constant 0 : i32
    return %c0_i32, %c0_i32_0 : i32, i32
  }
  func.func @transform_12(%arg0: i32) -> (i32, i32) {
    %c0_i32 = arith.constant 0 : i32
    %c0_i32_0 = arith.constant 0 : i32
    %c0_i32_1 = arith.constant 0 : i32
    return %c0_i32, %c0_i32_0 : i32, i32
  }
  func.func @transform_13(%arg0: i32) -> (i32, i32) {
    %c0_i32 = arith.constant 0 : i32
    %c0_i32_0 = arith.constant 0 : i32
    %c0_i32_1 = arith.constant 0 : i32
    return %c0_i32, %c0_i32_0 : i32, i32
  }
  func.func @transform_14(%arg0: i32) -> (i32, i32) {
    %c0_i32 = arith.constant 0 : i32
    %c0_i32_0 = arith.constant 0 : i32
    %c0_i32_1 = arith.constant 0 : i32
    return %c0_i32, %c0_i32_0 : i32, i32
  }
  func.func @transform_15(%arg0: i32) -> (i32, i32) {
    %c0_i32 = arith.constant 0 : i32
    %c0_i32_0 = arith.constant 0 : i32
    %c0_i32_1 = arith.constant 0 : i32
    return %c0_i32, %c0_i32_0 : i32, i32
  }
  func.func @transform_16(%arg0: i32) -> (i32, i32) {
    %c0_i32 = arith.constant 0 : i32
    %c0_i32_0 = arith.constant 0 : i32
    %c0_i32_1 = arith.constant 0 : i32
    return %c0_i32, %c0_i32_0 : i32, i32
  }
  func.func @transform_17(%arg0: i32) -> (i32, i32) {
    %c0_i32 = arith.constant 0 : i32
    %c0_i32_0 = arith.constant 0 : i32
    %c0_i32_1 = arith.constant 0 : i32
    return %c0_i32, %c0_i32_0 : i32, i32
  }
  func.func @transform_18(%arg0: i32) -> (i32, i32) {
    %c0_i32 = arith.constant 0 : i32
    %c0_i32_0 = arith.constant 0 : i32
    %c0_i32_1 = arith.constant 0 : i32
    return %c0_i32, %c0_i32_0 : i32, i32
  }
  func.func @transform_19(%arg0: i32) -> (i32, i32) {
    %c0_i32 = arith.constant 0 : i32
    %c0_i32_0 = arith.constant 0 : i32
    %c0_i32_1 = arith.constant 0 : i32
    return %c0_i32, %c0_i32_0 : i32, i32
  }
  func.func @transform_20(%arg0: i32) -> (i32, i32) {
    %c0_i32 = arith.constant 0 : i32
    %c0_i32_0 = arith.constant 0 : i32
    %c0_i32_1 = arith.constant 0 : i32
    return %c0_i32, %c0_i32_0 : i32, i32
  }
  func.func @transform_21(%arg0: i32) -> (i32, i32) {
    %c0_i32 = arith.constant 0 : i32
    %c0_i32_0 = arith.constant 0 : i32
    %c0_i32_1 = arith.constant 0 : i32
    return %c0_i32, %c0_i32_0 : i32, i32
  }
  func.func @transform_22(%arg0: i32) -> (i32, i32) {
    %c0_i32 = arith.constant 0 : i32
    %c0_i32_0 = arith.constant 0 : i32
    %c0_i32_1 = arith.constant 0 : i32
    return %c0_i32, %c0_i32_0 : i32, i32
  }
  func.func @transform_23(%arg0: i32) -> (i32, i32) {
    %c0_i32 = arith.constant 0 : i32
    %c0_i32_0 = arith.constant 0 : i32
    %c0_i32_1 = arith.constant 0 : i32
    return %c0_i32, %c0_i32_0 : i32, i32
  }
  func.func @transform_24(%arg0: i32) -> (i32, i32) {
    %c0_i32 = arith.constant 0 : i32
    %c0_i32_0 = arith.constant 0 : i32
    %c0_i32_1 = arith.constant 0 : i32
    return %c0_i32, %c0_i32_0 : i32, i32
  }
  func.func @transform_25(%arg0: i32) -> (i32, i32) {
    %c0_i32 = arith.constant 0 : i32
    %c0_i32_0 = arith.constant 0 : i32
    %c0_i32_1 = arith.constant 0 : i32
    return %c0_i32, %c0_i32_0 : i32, i32
  }
  func.func @transform_26(%arg0: i32) -> (i32, i32) {
    %c0_i32 = arith.constant 0 : i32
    %c0_i32_0 = arith.constant 0 : i32
    %c0_i32_1 = arith.constant 0 : i32
    return %c0_i32, %c0_i32_0 : i32, i32
  }
  func.func @transform_27(%arg0: i32) -> (i32, i32) {
    %c0_i32 = arith.constant 0 : i32
    %c0_i32_0 = arith.constant 0 : i32
    %c0_i32_1 = arith.constant 0 : i32
    return %c0_i32, %c0_i32_0 : i32, i32
  }
  func.func @transform_28(%arg0: i32) -> (i32, i32) {
    %c0_i32 = arith.constant 0 : i32
    %c0_i32_0 = arith.constant 0 : i32
    %c0_i32_1 = arith.constant 0 : i32
    return %c0_i32, %c0_i32_0 : i32, i32
  }
  func.func @transform_29(%arg0: i32) -> (i32, i32) {
    %c0_i32 = arith.constant 0 : i32
    %c0_i32_0 = arith.constant 0 : i32
    %c0_i32_1 = arith.constant 0 : i32
    return %c0_i32, %c0_i32_0 : i32, i32
  }
  func.func @transform_30(%arg0: i32) -> (i32, i32, i32) {
    %c0_i32 = arith.constant 0 : i32
    %c0_i32_0 = arith.constant 0 : i32
    %c0_i32_1 = arith.constant 0 : i32
    return %arg0, %c0_i32, %c0_i32_0 : i32, i32, i32
  }
}

</mosaic_0001>

<llo_original>
// kernel: gnn_graphpred2_forward.1
$region0: #{gnn_graphpred2_forward.1}
  #allocation0 [shape = 'u32[]', space=smem, size = 0x4, offset = 0x4, fixed_abs, tag = 'smem constant byte address 0x4 - core index']
  #allocation1 [shape = 'u32[72,128]{1,0:T(1,128)}', space=vmem, size = 0x9000, scoped, tag = 'internal scratch']
  %s0 = inlined_call_operand.smem [shape: u32[31], index: -1, kind: input, shape index: {}]
  %s1 = sld [smem:[%s0]]
  %s2 = scalar_lea.smem %s0, 1
  %s3 = sld [smem:[%s2]]
  %s4 = scalar_lea.smem %s0, 2
  %s5 = sld [smem:[%s4]]
  %s6 = scalar_lea.smem %s0, 3
  %s7 = sld [smem:[%s6]]
  %s8 = scalar_lea.smem %s0, 4
  %s9 = sld [smem:[%s8]]
  %s10 = scalar_lea.smem %s0, 5
  %s11 = sld [smem:[%s10]]
  %s12 = scalar_lea.smem %s0, 6
  %s13 = sld [smem:[%s12]]
  %s14 = scalar_lea.smem %s0, 7
  %s15 = sld [smem:[%s14]]
  %s16 = scalar_lea.smem %s0, 8
  %s17 = sld [smem:[%s16]]
  %s18 = scalar_lea.smem %s0, 9
  %s19 = sld [smem:[%s18]]
  %s20 = scalar_lea.smem %s0, 10
  %s21 = sld [smem:[%s20]]
  %s22 = scalar_lea.smem %s0, 11
  %s23 = sld [smem:[%s22]]
  %s24 = scalar_lea.smem %s0, 12
  %s25 = sld [smem:[%s24]]
  %s26 = scalar_lea.smem %s0, 13
  %s27 = sld [smem:[%s26]]
  %s28 = scalar_lea.smem %s0, 14
  %s29 = sld [smem:[%s28]]
  %s30 = scalar_lea.smem %s0, 15
  %s31 = sld [smem:[%s30]]
  %s32 = scalar_lea.smem %s0, 16
  %s33 = sld [smem:[%s32]]
  %s34 = scalar_lea.smem %s0, 17
  %s35 = sld [smem:[%s34]]
  %s36 = scalar_lea.smem %s0, 18
  %s37 = sld [smem:[%s36]]
  %s38 = scalar_lea.smem %s0, 19
  %s39 = sld [smem:[%s38]]
  %s40 = scalar_lea.smem %s0, 20
  %s41 = sld [smem:[%s40]]
  %s42 = scalar_lea.smem %s0, 21
  %s43 = sld [smem:[%s42]]
  %s44 = scalar_lea.smem %s0, 22
  %s45 = sld [smem:[%s44]]
  %s46 = scalar_lea.smem %s0, 23
  %s47 = sld [smem:[%s46]]
  %s48 = scalar_lea.smem %s0, 24
  %s49 = sld [smem:[%s48]]
  %s50 = scalar_lea.smem %s0, 25
  %s51 = sld [smem:[%s50]]
  %s52 = scalar_lea.smem %s0, 26
  %s53 = sld [smem:[%s52]]
  %s54 = scalar_lea.smem %s0, 27
  %s55 = sld [smem:[%s54]]
  %s56 = scalar_lea.smem %s0, 28
  %s57 = sld [smem:[%s56]]
  %s58 = scalar_lea.smem %s0, 29
  %s59 = sld [smem:[%s58]]
  %s60 = scalar_lea.smem %s0, 30
  %s61 = sld [smem:[%s60]]
  %s62 = sld [smem:[#allocation0]]
  $region153: #{gnn_graphpred2_forward.1} parent=0
    _
  %s64 = ssub.s32 1, %s62
  %s65 = scalar_select 0, %s64, %s62
  $region1: #{gnn_graphpred2_forward.1} parent=0
    #allocation2 [shape = 'u8[1024]{0}', space=vmem, size = 0x400, scoped, tag = 'output window, operand 0']
    #allocation3 [shape = 's32[2]{0}', space=sflag, size = 0x8, scoped, tag = 'scoped memory for gnn_graphpred2_forward.1']
    %66 = vsyncpa [#allocation3], 0
    %s67 = scalar_lea.sflag [#allocation3], 1
    %68 = vsyncpa %s67, 0
    loop: start=0, step=1, limit=4
    $region2: #{gnn_graphpred2_forward.1} parent=1 // loop_pre_header
      _
    $region3: #{gnn_graphpred2_forward.1} parent=1 // loop_header
      %s70 = sphi 0, %s74
      %p71 = scmp.ge.s32.totalorder %s70, 4
      %s80 = sphi 0, %s82
      %s83 = sphi 0, %s80
      %s84 = sphi 0, %s83
      %s100 = sphi 0, %s84
      %s106 = sphi 0, %s108
      %s109 = sphi 0, %s106
      %s110 = sphi 0, %s109
      %s126 = sphi 0, %s110
      %s132 = sphi 0, %s134
      %s135 = sphi 0, %s132
      %s136 = sphi 0, %s135
      %s152 = sphi 0, %s136
      %s158 = sphi 0, %s160
      %s161 = sphi 0, %s158
      %s162 = sphi 0, %s161
      %s178 = sphi 0, %s162
      %s184 = sphi 0, %s186
      %s187 = sphi 0, %s184
      %s188 = sphi 0, %s187
      %s204 = sphi 0, %s188
      %s208 = sphi 0, %s208
      %s210 = sphi 0, %s208
      %s211 = sphi 0, %s210
      %s225 = sphi 0, %s211
      %s229 = sphi 0, %s229
      %s231 = sphi 0, %s229
      %s232 = sphi 0, %s231
      %s246 = sphi 0, %s232
      %s250 = sphi 0, %s250
      %s252 = sphi 0, %s250
      %s253 = sphi 0, %s252
      %s267 = sphi 0, %s253
      %s271 = sphi 0, %s271
      %s273 = sphi 0, %s271
      %s274 = sphi 0, %s273
      %s288 = sphi 0, %s274
      %s292 = sphi 0, %s292
      %s294 = sphi 0, %s292
      %s295 = sphi 0, %s294
      %s309 = sphi 0, %s295
      %s313 = sphi 0, %s313
      %s315 = sphi 0, %s313
      %s316 = sphi 0, %s315
      %s330 = sphi 0, %s316
      %s334 = sphi 0, %s334
      %s336 = sphi 0, %s334
      %s337 = sphi 0, %s336
      %s351 = sphi 0, %s337
      %s355 = sphi 0, %s355
      %s357 = sphi 0, %s355
      %s358 = sphi 0, %s357
      %s372 = sphi 0, %s358
      %s376 = sphi 0, %s376
      %s378 = sphi 0, %s376
      %s379 = sphi 0, %s378
      %s393 = sphi 0, %s379
      %s397 = sphi 0, %s397
      %s399 = sphi 0, %s397
      %s400 = sphi 0, %s399
      %s414 = sphi 0, %s400
      %s418 = sphi 0, %s418
      %s420 = sphi 0, %s418
      %s421 = sphi 0, %s420
      %s435 = sphi 0, %s421
      %s439 = sphi 0, %s439
      %s441 = sphi 0, %s439
      %s442 = sphi 0, %s441
      %s456 = sphi 0, %s442
      %s460 = sphi 0, %s460
      %s462 = sphi 0, %s460
      %s463 = sphi 0, %s462
      %s477 = sphi 0, %s463
      %s481 = sphi 0, %s481
      %s483 = sphi 0, %s481
      %s484 = sphi 0, %s483
      %s498 = sphi 0, %s484
      %s502 = sphi 0, %s502
      %s504 = sphi 0, %s502
      %s505 = sphi 0, %s504
      %s519 = sphi 0, %s505
      %s523 = sphi 0, %s523
      %s525 = sphi 0, %s523
      %s526 = sphi 0, %s525
      %s540 = sphi 0, %s526
      %s544 = sphi 0, %s544
      %s546 = sphi 0, %s544
      %s547 = sphi 0, %s546
      %s561 = sphi 0, %s547
      %s565 = sphi 0, %s565
      %s567 = sphi 0, %s565
      %s568 = sphi 0, %s567
      %s582 = sphi 0, %s568
      %s586 = sphi 0, %s586
      %s588 = sphi 0, %s586
      %s589 = sphi 0, %s588
      %s603 = sphi 0, %s589
      %s607 = sphi 0, %s607
      %s609 = sphi 0, %s607
      %s610 = sphi 0, %s609
      %s624 = sphi 0, %s610
      %s628 = sphi 0, %s628
      %s630 = sphi 0, %s628
      %s631 = sphi 0, %s630
      %s645 = sphi 0, %s631
      %s649 = sphi 0, %s649
      %s651 = sphi 0, %s649
      %s652 = sphi 0, %s651
      %s666 = sphi 0, %s652
      %s670 = sphi 0, %s670
      %s672 = sphi 0, %s670
      %s673 = sphi 0, %s672
      %s687 = sphi 0, %s673
      %s691 = sphi 0, %s691
      %s693 = sphi 0, %s691
      %s694 = sphi 0, %s693
      %s708 = sphi 0, %s694
      %s712 = sphi 0, %s712
      %s714 = sphi 0, %s712
      %s715 = sphi 0, %s714
      %s729 = sphi 0, %s715
      %s735 = sphi 0, %s737
      %s738 = sphi 0, %s735
      %s739 = sphi 0, %s738
      %s755 = sphi 0, %s739
    $region4: #{gnn_graphpred2_forward.1} parent=1 // loop_header_branch
      %73 = sbr.rel (%p71) target = $region8
    $region5: #{gnn_graphpred2_forward.1} parent=1 // loop_body
      %s75 = ssub.s32 %s70, 1
      %s76 = ssub.s32 %s70, 2
      %s77 = sadd.s32 %s70, 1
      %s78 = ssub.s32 %s70, %s77
      %p79 = scmp.eq.s32.totalorder %s78, 0
      %s81 = sadd.s32 %s80, 1
      %s82 = scalar_select %p79, %s80, %s81
      %p85 = pneg %p79
      %p86 = scmp.eq.s32.totalorder %s70, 1
      %p87 = por %p85, %p86
      %p88 = scmp.ne.s32.totalorder %s80, %s83
      %p89 = scmp.eq.s32.totalorder %s70, 0
      %p90 = por %p88, %p89
      %p91 = scmp.ne.s32.totalorder %s80, %s83
      %p92 = scmp.eq.s32.totalorder %s75, 1
      %p93 = por %p91, %p92
      %p94 = scmp.ne.s32.totalorder %s83, %s84
      %p95 = scmp.eq.s32.totalorder %s75, 0
      %p96 = por %p94, %p95
      %p97 = scmp.ne.s32.totalorder %s83, %s84
      %p98 = scmp.eq.s32.totalorder %s76, 1
      %p99 = por %p97, %p98
      %p101 = scmp.ne.s32.totalorder %s84, %s100
      %p102 = scmp.eq.s32.totalorder %s76, 0
      %p103 = por %p101, %p102
      %s104 = ssub.s32 %s70, %s77
      %p105 = scmp.eq.s32.totalorder %s104, 0
      %s107 = sadd.s32 %s106, 1
      %s108 = scalar_select %p105, %s106, %s107
      %p111 = pneg %p105
      %p112 = scmp.eq.s32.totalorder %s70, 1
      %p113 = por %p111, %p112
      %p114 = scmp.ne.s32.totalorder %s106, %s109
      %p115 = scmp.eq.s32.totalorder %s70, 0
      %p116 = por %p114, %p115
      %p117 = scmp.ne.s32.totalorder %s106, %s109
      %p118 = scmp.eq.s32.totalorder %s75, 1
      %p119 = por %p117, %p118
      %p120 = scmp.ne.s32.totalorder %s109, %s110
      %p121 = scmp.eq.s32.totalorder %s75, 0
      %p122 = por %p120, %p121
      %p123 = scmp.ne.s32.totalorder %s109, %s110
      %p124 = scmp.eq.s32.totalorder %s76, 1
      %p125 = por %p123, %p124
      %p127 = scmp.ne.s32.totalorder %s110, %s126
      %p128 = scmp.eq.s32.totalorder %s76, 0
      %p129 = por %p127, %p128
      %s130 = ssub.s32 %s70, %s77
      %p131 = scmp.eq.s32.totalorder %s130, 0
      %s133 = sadd.s32 %s132, 1
      %s134 = scalar_select %p131, %s132, %s133
      %p137 = pneg %p131
      %p138 = scmp.eq.s32.totalorder %s70, 1
      %p139 = por %p137, %p138
      %p140 = scmp.ne.s32.totalorder %s132, %s135
      %p141 = scmp.eq.s32.totalorder %s70, 0
      %p142 = por %p140, %p141
      %p143 = scmp.ne.s32.totalorder %s132, %s135
      %p144 = scmp.eq.s32.totalorder %s75, 1
      %p145 = por %p143, %p144
      %p146 = scmp.ne.s32.totalorder %s135, %s136
      %p147 = scmp.eq.s32.totalorder %s75, 0
      %p148 = por %p146, %p147
      %p149 = scmp.ne.s32.totalorder %s135, %s136
      %p150 = scmp.eq.s32.totalorder %s76, 1
      %p151 = por %p149, %p150
      %p153 = scmp.ne.s32.totalorder %s136, %s152
      %p154 = scmp.eq.s32.totalorder %s76, 0
      %p155 = por %p153, %p154
      %s156 = ssub.s32 %s70, %s77
      %p157 = scmp.eq.s32.totalorder %s156, 0
      %s159 = sadd.s32 %s158, 1
      %s160 = scalar_select %p157, %s158, %s159
      %p163 = pneg %p157
      %p164 = scmp.eq.s32.totalorder %s70, 1
      %p165 = por %p163, %p164
      %p166 = scmp.ne.s32.totalorder %s158, %s161
      %p167 = scmp.eq.s32.totalorder %s70, 0
      %p168 = por %p166, %p167
      %p169 = scmp.ne.s32.totalorder %s158, %s161
      %p170 = scmp.eq.s32.totalorder %s75, 1
      %p171 = por %p169, %p170
      %p172 = scmp.ne.s32.totalorder %s161, %s162
      %p173 = scmp.eq.s32.totalorder %s75, 0
      %p174 = por %p172, %p173
      %p175 = scmp.ne.s32.totalorder %s161, %s162
      %p176 = scmp.eq.s32.totalorder %s76, 1
      %p177 = por %p175, %p176
      %p179 = scmp.ne.s32.totalorder %s162, %s178
      %p180 = scmp.eq.s32.totalorder %s76, 0
      %p181 = por %p179, %p180
      %s182 = ssub.s32 %s70, %s77
      %p183 = scmp.eq.s32.totalorder %s182, 0
      %s185 = sadd.s32 %s184, 1
      %s186 = scalar_select %p183, %s184, %s185
      %p189 = pneg %p183
      %p190 = scmp.eq.s32.totalorder %s70, 1
      %p191 = por %p189, %p190
      %p192 = scmp.ne.s32.totalorder %s184, %s187
      %p193 = scmp.eq.s32.totalorder %s70, 0
      %p194 = por %p192, %p193
      %p195 = scmp.ne.s32.totalorder %s184, %s187
      %p196 = scmp.eq.s32.totalorder %s75, 1
      %p197 = por %p195, %p196
      %p198 = scmp.ne.s32.totalorder %s187, %s188
      %p199 = scmp.eq.s32.totalorder %s75, 0
      %p200 = por %p198, %p199
      %p201 = scmp.ne.s32.totalorder %s187, %s188
      %p202 = scmp.eq.s32.totalorder %s76, 1
      %p203 = por %p201, %p202
      %p205 = scmp.ne.s32.totalorder %s188, %s204
      %p206 = scmp.eq.s32.totalorder %s76, 0
      %p207 = por %p205, %p206
      %s209 = sadd.s32 %s208, 1
      %p212 = scmp.eq.s32.totalorder %s70, 1
      %p213 = scmp.ne.s32.totalorder %s208, %s210
      %p214 = scmp.eq.s32.totalorder %s70, 0
      %p215 = por %p213, %p214
      %p216 = scmp.ne.s32.totalorder %s208, %s210
      %p217 = scmp.eq.s32.totalorder %s75, 1
      %p218 = por %p216, %p217
      %p219 = scmp.ne.s32.totalorder %s210, %s211
      %p220 = scmp.eq.s32.totalorder %s75, 0
      %p221 = por %p219, %p220
      %p222 = scmp.ne.s32.totalorder %s210, %s211
      %p223 = scmp.eq.s32.totalorder %s76, 1
      %p224 = por %p222, %p223
      %p226 = scmp.ne.s32.totalorder %s211, %s225
      %p227 = scmp.eq.s32.totalorder %s76, 0
      %p228 = por %p226, %p227
      %s230 = sadd.s32 %s229, 1
      %p233 = scmp.eq.s32.totalorder %s70, 1
      %p234 = scmp.ne.s32.totalorder %s229, %s231
      %p235 = scmp.eq.s32.totalorder %s70, 0
      %p236 = por %p234, %p235
      %p237 = scmp.ne.s32.totalorder %s229, %s231
      %p238 = scmp.eq.s32.totalorder %s75, 1
      %p239 = por %p237, %p238
      %p240 = scmp.ne.s32.totalorder %s231, %s232
      %p241 = scmp.eq.s32.totalorder %s75, 0
      %p242 = por %p240, %p241
      %p243 = scmp.ne.s32.totalorder %s231, %s232
      %p244 = scmp.eq.s32.totalorder %s76, 1
      %p245 = por %p243, %p244
      %p247 = scmp.ne.s32.totalorder %s232, %s246
      %p248 = scmp.eq.s32.totalorder %s76, 0
      %p249 = por %p247, %p248
      %s251 = sadd.s32 %s250, 1
      %p254 = scmp.eq.s32.totalorder %s70, 1
      %p255 = scmp.ne.s32.totalorder %s250, %s252
      %p256 = scmp.eq.s32.totalorder %s70, 0
      %p257 = por %p255, %p256
      %p258 = scmp.ne.s32.totalorder %s250, %s252
      %p259 = scmp.eq.s32.totalorder %s75, 1
      %p260 = por %p258, %p259
      %p261 = scmp.ne.s32.totalorder %s252, %s253
      %p262 = scmp.eq.s32.totalorder %s75, 0
      %p263 = por %p261, %p262
      %p264 = scmp.ne.s32.totalorder %s252, %s253
      %p265 = scmp.eq.s32.totalorder %s76, 1
      %p266 = por %p264, %p265
      %p268 = scmp.ne.s32.totalorder %s253, %s267
      %p269 = scmp.eq.s32.totalorder %s76, 0
      %p270 = por %p268, %p269
      %s272 = sadd.s32 %s271, 1
      %p275 = scmp.eq.s32.totalorder %s70, 1
      %p276 = scmp.ne.s32.totalorder %s271, %s273
      %p277 = scmp.eq.s32.totalorder %s70, 0
      %p278 = por %p276, %p277
      %p279 = scmp.ne.s32.totalorder %s271, %s273
      %p280 = scmp.eq.s32.totalorder %s75, 1
      %p281 = por %p279, %p280
      %p282 = scmp.ne.s32.totalorder %s273, %s274
      %p283 = scmp.eq.s32.totalorder %s75, 0
      %p284 = por %p282, %p283
      %p285 = scmp.ne.s32.totalorder %s273, %s274
      %p286 = scmp.eq.s32.totalorder %s76, 1
      %p287 = por %p285, %p286
      %p289 = scmp.ne.s32.totalorder %s274, %s288
      %p290 = scmp.eq.s32.totalorder %s76, 0
      %p291 = por %p289, %p290
      %s293 = sadd.s32 %s292, 1
      %p296 = scmp.eq.s32.totalorder %s70, 1
      %p297 = scmp.ne.s32.totalorder %s292, %s294
      %p298 = scmp.eq.s32.totalorder %s70, 0
      %p299 = por %p297, %p298
      %p300 = scmp.ne.s32.totalorder %s292, %s294
      %p301 = scmp.eq.s32.totalorder %s75, 1
      %p302 = por %p300, %p301
      %p303 = scmp.ne.s32.totalorder %s294, %s295
      %p304 = scmp.eq.s32.totalorder %s75, 0
      %p305 = por %p303, %p304
      %p306 = scmp.ne.s32.totalorder %s294, %s295
      %p307 = scmp.eq.s32.totalorder %s76, 1
      %p308 = por %p306, %p307
      %p310 = scmp.ne.s32.totalorder %s295, %s309
      %p311 = scmp.eq.s32.totalorder %s76, 0
      %p312 = por %p310, %p311
      %s314 = sadd.s32 %s313, 1
      %p317 = scmp.eq.s32.totalorder %s70, 1
      %p318 = scmp.ne.s32.totalorder %s313, %s315
      %p319 = scmp.eq.s32.totalorder %s70, 0
      %p320 = por %p318, %p319
      %p321 = scmp.ne.s32.totalorder %s313, %s315
      %p322 = scmp.eq.s32.totalorder %s75, 1
      %p323 = por %p321, %p322
      %p324 = scmp.ne.s32.totalorder %s315, %s316
      %p325 = scmp.eq.s32.totalorder %s75, 0
      %p326 = por %p324, %p325
      %p327 = scmp.ne.s32.totalorder %s315, %s316
      %p328 = scmp.eq.s32.totalorder %s76, 1
      %p329 = por %p327, %p328
      %p331 = scmp.ne.s32.totalorder %s316, %s330
      %p332 = scmp.eq.s32.totalorder %s76, 0
      %p333 = por %p331, %p332
      %s335 = sadd.s32 %s334, 1
      %p338 = scmp.eq.s32.totalorder %s70, 1
      %p339 = scmp.ne.s32.totalorder %s334, %s336
      %p340 = scmp.eq.s32.totalorder %s70, 0
      %p341 = por %p339, %p340
      %p342 = scmp.ne.s32.totalorder %s334, %s336
      %p343 = scmp.eq.s32.totalorder %s75, 1
      %p344 = por %p342, %p343
      %p345 = scmp.ne.s32.totalorder %s336, %s337
      %p346 = scmp.eq.s32.totalorder %s75, 0
      %p347 = por %p345, %p346
      %p348 = scmp.ne.s32.totalorder %s336, %s337
      %p349 = scmp.eq.s32.totalorder %s76, 1
      %p350 = por %p348, %p349
      %p352 = scmp.ne.s32.totalorder %s337, %s351
      %p353 = scmp.eq.s32.totalorder %s76, 0
      %p354 = por %p352, %p353
      %s356 = sadd.s32 %s355, 1
      %p359 = scmp.eq.s32.totalorder %s70, 1
      %p360 = scmp.ne.s32.totalorder %s355, %s357
      %p361 = scmp.eq.s32.totalorder %s70, 0
      %p362 = por %p360, %p361
      %p363 = scmp.ne.s32.totalorder %s355, %s357
      %p364 = scmp.eq.s32.totalorder %s75, 1
      %p365 = por %p363, %p364
      %p366 = scmp.ne.s32.totalorder %s357, %s358
      %p367 = scmp.eq.s32.totalorder %s75, 0
      %p368 = por %p366, %p367
      %p369 = scmp.ne.s32.totalorder %s357, %s358
      %p370 = scmp.eq.s32.totalorder %s76, 1
      %p371 = por %p369, %p370
      %p373 = scmp.ne.s32.totalorder %s358, %s372
      %p374 = scmp.eq.s32.totalorder %s76, 0
      %p375 = por %p373, %p374
      %s377 = sadd.s32 %s376, 1
      %p380 = scmp.eq.s32.totalorder %s70, 1
      %p381 = scmp.ne.s32.totalorder %s376, %s378
      %p382 = scmp.eq.s32.totalorder %s70, 0
      %p383 = por %p381, %p382
      %p384 = scmp.ne.s32.totalorder %s376, %s378
      %p385 = scmp.eq.s32.totalorder %s75, 1
      %p386 = por %p384, %p385
      %p387 = scmp.ne.s32.totalorder %s378, %s379
      %p388 = scmp.eq.s32.totalorder %s75, 0
      %p389 = por %p387, %p388
      %p390 = scmp.ne.s32.totalorder %s378, %s379
      %p391 = scmp.eq.s32.totalorder %s76, 1
      %p392 = por %p390, %p391
      %p394 = scmp.ne.s32.totalorder %s379, %s393
      %p395 = scmp.eq.s32.totalorder %s76, 0
      %p396 = por %p394, %p395
      %s398 = sadd.s32 %s397, 1
      %p401 = scmp.eq.s32.totalorder %s70, 1
      %p402 = scmp.ne.s32.totalorder %s397, %s399
      %p403 = scmp.eq.s32.totalorder %s70, 0
      %p404 = por %p402, %p403
      %p405 = scmp.ne.s32.totalorder %s397, %s399
      %p406 = scmp.eq.s32.totalorder %s75, 1
      %p407 = por %p405, %p406
      %p408 = scmp.ne.s32.totalorder %s399, %s400
      %p409 = scmp.eq.s32.totalorder %s75, 0
      %p410 = por %p408, %p409
      %p411 = scmp.ne.s32.totalorder %s399, %s400
      %p412 = scmp.eq.s32.totalorder %s76, 1
      %p413 = por %p411, %p412
      %p415 = scmp.ne.s32.totalorder %s400, %s414
      %p416 = scmp.eq.s32.totalorder %s76, 0
      %p417 = por %p415, %p416
      %s419 = sadd.s32 %s418, 1
      %p422 = scmp.eq.s32.totalorder %s70, 1
      %p423 = scmp.ne.s32.totalorder %s418, %s420
      %p424 = scmp.eq.s32.totalorder %s70, 0
      %p425 = por %p423, %p424
      %p426 = scmp.ne.s32.totalorder %s418, %s420
      %p427 = scmp.eq.s32.totalorder %s75, 1
      %p428 = por %p426, %p427
      %p429 = scmp.ne.s32.totalorder %s420, %s421
      %p430 = scmp.eq.s32.totalorder %s75, 0
      %p431 = por %p429, %p430
      %p432 = scmp.ne.s32.totalorder %s420, %s421
      %p433 = scmp.eq.s32.totalorder %s76, 1
      %p434 = por %p432, %p433
      %p436 = scmp.ne.s32.totalorder %s421, %s435
      %p437 = scmp.eq.s32.totalorder %s76, 0
      %p438 = por %p436, %p437
      %s440 = sadd.s32 %s439, 1
      %p443 = scmp.eq.s32.totalorder %s70, 1
      %p444 = scmp.ne.s32.totalorder %s439, %s441
      %p445 = scmp.eq.s32.totalorder %s70, 0
      %p446 = por %p444, %p445
      %p447 = scmp.ne.s32.totalorder %s439, %s441
      %p448 = scmp.eq.s32.totalorder %s75, 1
      %p449 = por %p447, %p448
      %p450 = scmp.ne.s32.totalorder %s441, %s442
      %p451 = scmp.eq.s32.totalorder %s75, 0
      %p452 = por %p450, %p451
      %p453 = scmp.ne.s32.totalorder %s441, %s442
      %p454 = scmp.eq.s32.totalorder %s76, 1
      %p455 = por %p453, %p454
      %p457 = scmp.ne.s32.totalorder %s442, %s456
      %p458 = scmp.eq.s32.totalorder %s76, 0
      %p459 = por %p457, %p458
      %s461 = sadd.s32 %s460, 1
      %p464 = scmp.eq.s32.totalorder %s70, 1
      %p465 = scmp.ne.s32.totalorder %s460, %s462
      %p466 = scmp.eq.s32.totalorder %s70, 0
      %p467 = por %p465, %p466
      %p468 = scmp.ne.s32.totalorder %s460, %s462
      %p469 = scmp.eq.s32.totalorder %s75, 1
      %p470 = por %p468, %p469
      %p471 = scmp.ne.s32.totalorder %s462, %s463
      %p472 = scmp.eq.s32.totalorder %s75, 0
      %p473 = por %p471, %p472
      %p474 = scmp.ne.s32.totalorder %s462, %s463
      %p475 = scmp.eq.s32.totalorder %s76, 1
      %p476 = por %p474, %p475
      %p478 = scmp.ne.s32.totalorder %s463, %s477
      %p479 = scmp.eq.s32.totalorder %s76, 0
      %p480 = por %p478, %p479
      %s482 = sadd.s32 %s481, 1
      %p485 = scmp.eq.s32.totalorder %s70, 1
      %p486 = scmp.ne.s32.totalorder %s481, %s483
      %p487 = scmp.eq.s32.totalorder %s70, 0
      %p488 = por %p486, %p487
      %p489 = scmp.ne.s32.totalorder %s481, %s483
      %p490 = scmp.eq.s32.totalorder %s75, 1
      %p491 = por %p489, %p490
      %p492 = scmp.ne.s32.totalorder %s483, %s484
      %p493 = scmp.eq.s32.totalorder %s75, 0
      %p494 = por %p492, %p493
      %p495 = scmp.ne.s32.totalorder %s483, %s484
      %p496 = scmp.eq.s32.totalorder %s76, 1
      %p497 = por %p495, %p496
      %p499 = scmp.ne.s32.totalorder %s484, %s498
      %p500 = scmp.eq.s32.totalorder %s76, 0
      %p501 = por %p499, %p500
      %s503 = sadd.s32 %s502, 1
      %p506 = scmp.eq.s32.totalorder %s70, 1
      %p507 = scmp.ne.s32.totalorder %s502, %s504
      %p508 = scmp.eq.s32.totalorder %s70, 0
      %p509 = por %p507, %p508
      %p510 = scmp.ne.s32.totalorder %s502, %s504
      %p511 = scmp.eq.s32.totalorder %s75, 1
      %p512 = por %p510, %p511
      %p513 = scmp.ne.s32.totalorder %s504, %s505
      %p514 = scmp.eq.s32.totalorder %s75, 0
      %p515 = por %p513, %p514
      %p516 = scmp.ne.s32.totalorder %s504, %s505
      %p517 = scmp.eq.s32.totalorder %s76, 1
      %p518 = por %p516, %p517
      %p520 = scmp.ne.s32.totalorder %s505, %s519
      %p521 = scmp.eq.s32.totalorder %s76, 0
      %p522 = por %p520, %p521
      %s524 = sadd.s32 %s523, 1
      %p527 = scmp.eq.s32.totalorder %s70, 1
      %p528 = scmp.ne.s32.totalorder %s523, %s525
      %p529 = scmp.eq.s32.totalorder %s70, 0
      %p530 = por %p528, %p529
      %p531 = scmp.ne.s32.totalorder %s523, %s525
      %p532 = scmp.eq.s32.totalorder %s75, 1
      %p533 = por %p531, %p532
      %p534 = scmp.ne.s32.totalorder %s525, %s526
      %p535 = scmp.eq.s32.totalorder %s75, 0
      %p536 = por %p534, %p535
      %p537 = scmp.ne.s32.totalorder %s525, %s526
      %p538 = scmp.eq.s32.totalorder %s76, 1
      %p539 = por %p537, %p538
      %p541 = scmp.ne.s32.totalorder %s526, %s540
      %p542 = scmp.eq.s32.totalorder %s76, 0
      %p543 = por %p541, %p542
      %s545 = sadd.s32 %s544, 1
      %p548 = scmp.eq.s32.totalorder %s70, 1
      %p549 = scmp.ne.s32.totalorder %s544, %s546
      %p550 = scmp.eq.s32.totalorder %s70, 0
      %p551 = por %p549, %p550
      %p552 = scmp.ne.s32.totalorder %s544, %s546
      %p553 = scmp.eq.s32.totalorder %s75, 1
      %p554 = por %p552, %p553
      %p555 = scmp.ne.s32.totalorder %s546, %s547
      %p556 = scmp.eq.s32.totalorder %s75, 0
      %p557 = por %p555, %p556
      %p558 = scmp.ne.s32.totalorder %s546, %s547
      %p559 = scmp.eq.s32.totalorder %s76, 1
      %p560 = por %p558, %p559
      %p562 = scmp.ne.s32.totalorder %s547, %s561
      %p563 = scmp.eq.s32.totalorder %s76, 0
      %p564 = por %p562, %p563
      %s566 = sadd.s32 %s565, 1
      %p569 = scmp.eq.s32.totalorder %s70, 1
      %p570 = scmp.ne.s32.totalorder %s565, %s567
      %p571 = scmp.eq.s32.totalorder %s70, 0
      %p572 = por %p570, %p571
      %p573 = scmp.ne.s32.totalorder %s565, %s567
      %p574 = scmp.eq.s32.totalorder %s75, 1
      %p575 = por %p573, %p574
      %p576 = scmp.ne.s32.totalorder %s567, %s568
      %p577 = scmp.eq.s32.totalorder %s75, 0
      %p578 = por %p576, %p577
      %p579 = scmp.ne.s32.totalorder %s567, %s568
      %p580 = scmp.eq.s32.totalorder %s76, 1
      %p581 = por %p579, %p580
      %p583 = scmp.ne.s32.totalorder %s568, %s582
      %p584 = scmp.eq.s32.totalorder %s76, 0
      %p585 = por %p583, %p584
      %s587 = sadd.s32 %s586, 1
      %p590 = scmp.eq.s32.totalorder %s70, 1
      %p591 = scmp.ne.s32.totalorder %s586, %s588
      %p592 = scmp.eq.s32.totalorder %s70, 0
      %p593 = por %p591, %p592
      %p594 = scmp.ne.s32.totalorder %s586, %s588
      %p595 = scmp.eq.s32.totalorder %s75, 1
      %p596 = por %p594, %p595
      %p597 = scmp.ne.s32.totalorder %s588, %s589
      %p598 = scmp.eq.s32.totalorder %s75, 0
      %p599 = por %p597, %p598
      %p600 = scmp.ne.s32.totalorder %s588, %s589
      %p601 = scmp.eq.s32.totalorder %s76, 1
      %p602 = por %p600, %p601
      %p604 = scmp.ne.s32.totalorder %s589, %s603
      %p605 = scmp.eq.s32.totalorder %s76, 0
      %p606 = por %p604, %p605
      %s608 = sadd.s32 %s607, 1
      %p611 = scmp.eq.s32.totalorder %s70, 1
      %p612 = scmp.ne.s32.totalorder %s607, %s609
      %p613 = scmp.eq.s32.totalorder %s70, 0
      %p614 = por %p612, %p613
      %p615 = scmp.ne.s32.totalorder %s607, %s609
      %p616 = scmp.eq.s32.totalorder %s75, 1
      %p617 = por %p615, %p616
      %p618 = scmp.ne.s32.totalorder %s609, %s610
      %p619 = scmp.eq.s32.totalorder %s75, 0
      %p620 = por %p618, %p619
      %p621 = scmp.ne.s32.totalorder %s609, %s610
      %p622 = scmp.eq.s32.totalorder %s76, 1
      %p623 = por %p621, %p622
      %p625 = scmp.ne.s32.totalorder %s610, %s624
      %p626 = scmp.eq.s32.totalorder %s76, 0
      %p627 = por %p625, %p626
      %s629 = sadd.s32 %s628, 1
      %p632 = scmp.eq.s32.totalorder %s70, 1
      %p633 = scmp.ne.s32.totalorder %s628, %s630
      %p634 = scmp.eq.s32.totalorder %s70, 0
      %p635 = por %p633, %p634
      %p636 = scmp.ne.s32.totalorder %s628, %s630
      %p637 = scmp.eq.s32.totalorder %s75, 1
      %p638 = por %p636, %p637
      %p639 = scmp.ne.s32.totalorder %s630, %s631
      %p640 = scmp.eq.s32.totalorder %s75, 0
      %p641 = por %p639, %p640
      %p642 = scmp.ne.s32.totalorder %s630, %s631
      %p643 = scmp.eq.s32.totalorder %s76, 1
      %p644 = por %p642, %p643
      %p646 = scmp.ne.s32.totalorder %s631, %s645
      %p647 = scmp.eq.s32.totalorder %s76, 0
      %p648 = por %p646, %p647
      %s650 = sadd.s32 %s649, 1
      %p653 = scmp.eq.s32.totalorder %s70, 1
      %p654 = scmp.ne.s32.totalorder %s649, %s651
      %p655 = scmp.eq.s32.totalorder %s70, 0
      %p656 = por %p654, %p655
      %p657 = scmp.ne.s32.totalorder %s649, %s651
      %p658 = scmp.eq.s32.totalorder %s75, 1
      %p659 = por %p657, %p658
      %p660 = scmp.ne.s32.totalorder %s651, %s652
      %p661 = scmp.eq.s32.totalorder %s75, 0
      %p662 = por %p660, %p661
      %p663 = scmp.ne.s32.totalorder %s651, %s652
      %p664 = scmp.eq.s32.totalorder %s76, 1
      %p665 = por %p663, %p664
      %p667 = scmp.ne.s32.totalorder %s652, %s666
      %p668 = scmp.eq.s32.totalorder %s76, 0
      %p669 = por %p667, %p668
      %s671 = sadd.s32 %s670, 1
      %p674 = scmp.eq.s32.totalorder %s70, 1
      %p675 = scmp.ne.s32.totalorder %s670, %s672
      %p676 = scmp.eq.s32.totalorder %s70, 0
      %p677 = por %p675, %p676
      %p678 = scmp.ne.s32.totalorder %s670, %s672
      %p679 = scmp.eq.s32.totalorder %s75, 1
      %p680 = por %p678, %p679
      %p681 = scmp.ne.s32.totalorder %s672, %s673
      %p682 = scmp.eq.s32.totalorder %s75, 0
      %p683 = por %p681, %p682
      %p684 = scmp.ne.s32.totalorder %s672, %s673
      %p685 = scmp.eq.s32.totalorder %s76, 1
      %p686 = por %p684, %p685
      %p688 = scmp.ne.s32.totalorder %s673, %s687
      %p689 = scmp.eq.s32.totalorder %s76, 0
      %p690 = por %p688, %p689
      %s692 = sadd.s32 %s691, 1
      %p695 = scmp.eq.s32.totalorder %s70, 1
      %p696 = scmp.ne.s32.totalorder %s691, %s693
      %p697 = scmp.eq.s32.totalorder %s70, 0
      %p698 = por %p696, %p697
      %p699 = scmp.ne.s32.totalorder %s691, %s693
      %p700 = scmp.eq.s32.totalorder %s75, 1
      %p701 = por %p699, %p700
      %p702 = scmp.ne.s32.totalorder %s693, %s694
      %p703 = scmp.eq.s32.totalorder %s75, 0
      %p704 = por %p702, %p703
      %p705 = scmp.ne.s32.totalorder %s693, %s694
      %p706 = scmp.eq.s32.totalorder %s76, 1
      %p707 = por %p705, %p706
      %p709 = scmp.ne.s32.totalorder %s694, %s708
      %p710 = scmp.eq.s32.totalorder %s76, 0
      %p711 = por %p709, %p710
      %s713 = sadd.s32 %s712, 1
      %p716 = scmp.eq.s32.totalorder %s70, 1
      %p717 = scmp.ne.s32.totalorder %s712, %s714
      %p718 = scmp.eq.s32.totalorder %s70, 0
      %p719 = por %p717, %p718
      %p720 = scmp.ne.s32.totalorder %s712, %s714
      %p721 = scmp.eq.s32.totalorder %s75, 1
      %p722 = por %p720, %p721
      %p723 = scmp.ne.s32.totalorder %s714, %s715
      %p724 = scmp.eq.s32.totalorder %s75, 0
      %p725 = por %p723, %p724
      %p726 = scmp.ne.s32.totalorder %s714, %s715
      %p727 = scmp.eq.s32.totalorder %s76, 1
      %p728 = por %p726, %p727
      %p730 = scmp.ne.s32.totalorder %s715, %s729
      %p731 = scmp.eq.s32.totalorder %s76, 0
      %p732 = por %p730, %p731
      %s733 = ssub.s32 %s70, %s77
      %p734 = scmp.eq.s32.totalorder %s733, 0
      %s736 = sadd.s32 %s735, 1
      %s737 = scalar_select %p734, %s735, %s736
      %p740 = pneg %p734
      %p741 = scmp.eq.s32.totalorder %s70, 1
      %p742 = por %p740, %p741
      %p743 = scmp.ne.s32.totalorder %s735, %s738
      %p744 = scmp.eq.s32.totalorder %s70, 0
      %p745 = por %p743, %p744
      %p746 = scmp.ne.s32.totalorder %s735, %s738
      %p747 = scmp.eq.s32.totalorder %s75, 1
      %p748 = por %p746, %p747
      %p749 = scmp.ne.s32.totalorder %s738, %s739
      %p750 = scmp.eq.s32.totalorder %s75, 0
      %p751 = por %p749, %p750
      %p752 = scmp.ne.s32.totalorder %s738, %s739
      %p753 = scmp.eq.s32.totalorder %s76, 1
      %p754 = por %p752, %p753
      %p756 = scmp.ne.s32.totalorder %s739, %s755
      %p757 = scmp.eq.s32.totalorder %s76, 0
      %p758 = por %p756, %p757
      %p759 = scmp.le.s32.totalorder 1, %s70
      %p760 = scmp.lt.s32.totalorder %s70, 3
      %p761 = pnand %p759, %p760
      %p762 = pneg %p761
      // Predicated region
      $region9: #{gnn_graphpred2_forward.1} parent=5 // pred_check
        _
      $region10: #{gnn_graphpred2_forward.1} parent=5 // pred_check_branch
        %764 = sbr.rel (%p761) target = $region12
      $region11: #{gnn_graphpred2_forward.1} parent=5 // pred_region
        %s765 = ssub.s32 %s70, 1
        // Predicated region
        $region13: #{gnn_graphpred2_forward.1} parent=11 // pred_check
          %p766 = pneg %p221
        $region14: #{gnn_graphpred2_forward.1} parent=11 // pred_check_branch
          %768 = sbr.rel (%p766) target = $region16
        $region15: #{gnn_graphpred2_forward.1} parent=11 // pred_region
          _
        $region16: #{gnn_graphpred2_forward.1} parent=11 // pred_fallthru
          _
        // Predicated region
        $region17: #{gnn_graphpred2_forward.1} parent=11 // pred_check
          %p769 = pneg %p242
        $region18: #{gnn_graphpred2_forward.1} parent=11 // pred_check_branch
          %771 = sbr.rel (%p769) target = $region20
        $region19: #{gnn_graphpred2_forward.1} parent=11 // pred_region
          _
        $region20: #{gnn_graphpred2_forward.1} parent=11 // pred_fallthru
          _
        // Predicated region
        $region21: #{gnn_graphpred2_forward.1} parent=11 // pred_check
          %p772 = pneg %p263
        $region22: #{gnn_graphpred2_forward.1} parent=11 // pred_check_branch
          %774 = sbr.rel (%p772) target = $region24
        $region23: #{gnn_graphpred2_forward.1} parent=11 // pred_region
          _
        $region24: #{gnn_graphpred2_forward.1} parent=11 // pred_fallthru
          _
        // Predicated region
        $region25: #{gnn_graphpred2_forward.1} parent=11 // pred_check
          %p775 = pneg %p284
        $region26: #{gnn_graphpred2_forward.1} parent=11 // pred_check_branch
          %777 = sbr.rel (%p775) target = $region28
        $region27: #{gnn_graphpred2_forward.1} parent=11 // pred_region
          _
        $region28: #{gnn_graphpred2_forward.1} parent=11 // pred_fallthru
          _
        // Predicated region
        $region29: #{gnn_graphpred2_forward.1} parent=11 // pred_check
          %p778 = pneg %p305
        $region30: #{gnn_graphpred2_forward.1} parent=11 // pred_check_branch
          %780 = sbr.rel (%p778) target = $region32
        $region31: #{gnn_graphpred2_forward.1} parent=11 // pred_region
          _
        $region32: #{gnn_graphpred2_forward.1} parent=11 // pred_fallthru
          _
        // Predicated region
        $region33: #{gnn_graphpred2_forward.1} parent=11 // pred_check
          %p781 = pneg %p326
        $region34: #{gnn_graphpred2_forward.1} parent=11 // pred_check_branch
          %783 = sbr.rel (%p781) target = $region36
        $region35: #{gnn_graphpred2_forward.1} parent=11 // pred_region
          _
        $region36: #{gnn_graphpred2_forward.1} parent=11 // pred_fallthru
          _
        // Predicated region
        $region37: #{gnn_graphpred2_forward.1} parent=11 // pred_check
          %p784 = pneg %p347
        $region38: #{gnn_graphpred2_forward.1} parent=11 // pred_check_branch
          %786 = sbr.rel (%p784) target = $region40
        $region39: #{gnn_graphpred2_forward.1} parent=11 // pred_region
          _
        $region40: #{gnn_graphpred2_forward.1} parent=11 // pred_fallthru
          _
        // Predicated region
        $region41: #{gnn_graphpred2_forward.1} parent=11 // pred_check
          %p787 = pneg %p368
        $region42: #{gnn_graphpred2_forward.1} parent=11 // pred_check_branch
          %789 = sbr.rel (%p787) target = $region44
        $region43: #{gnn_graphpred2_forward.1} parent=11 // pred_region
          _
        $region44: #{gnn_graphpred2_forward.1} parent=11 // pred_fallthru
          _
        // Predicated region
        $region45: #{gnn_graphpred2_forward.1} parent=11 // pred_check
          %p790 = pneg %p389
        $region46: #{gnn_graphpred2_forward.1} parent=11 // pred_check_branch
          %792 = sbr.rel (%p790) target = $region48
        $region47: #{gnn_graphpred2_forward.1} parent=11 // pred_region
          _
        $region48: #{gnn_graphpred2_forward.1} parent=11 // pred_fallthru
          _
        // Predicated region
        $region49: #{gnn_graphpred2_forward.1} parent=11 // pred_check
          %p793 = pneg %p410
        $region50: #{gnn_graphpred2_forward.1} parent=11 // pred_check_branch
          %795 = sbr.rel (%p793) target = $region52
        $region51: #{gnn_graphpred2_forward.1} parent=11 // pred_region
          _
        $region52: #{gnn_graphpred2_forward.1} parent=11 // pred_fallthru
          _
        // Predicated region
        $region53: #{gnn_graphpred2_forward.1} parent=11 // pred_check
          %p796 = pneg %p431
        $region54: #{gnn_graphpred2_forward.1} parent=11 // pred_check_branch
          %798 = sbr.rel (%p796) target = $region56
        $region55: #{gnn_graphpred2_forward.1} parent=11 // pred_region
          _
        $region56: #{gnn_graphpred2_forward.1} parent=11 // pred_fallthru
          _
        // Predicated region
        $region57: #{gnn_graphpred2_forward.1} parent=11 // pred_check
          %p799 = pneg %p452
        $region58: #{gnn_graphpred2_forward.1} parent=11 // pred_check_branch
          %801 = sbr.rel (%p799) target = $region60
        $region59: #{gnn_graphpred2_forward.1} parent=11 // pred_region
          _
        $region60: #{gnn_graphpred2_forward.1} parent=11 // pred_fallthru
          _
        // Predicated region
        $region61: #{gnn_graphpred2_forward.1} parent=11 // pred_check
          %p802 = pneg %p473
        $region62: #{gnn_graphpred2_forward.1} parent=11 // pred_check_branch
          %804 = sbr.rel (%p802) target = $region64
        $region63: #{gnn_graphpred2_forward.1} parent=11 // pred_region
          _
        $region64: #{gnn_graphpred2_forward.1} parent=11 // pred_fallthru
          _
        // Predicated region
        $region65: #{gnn_graphpred2_forward.1} parent=11 // pred_check
          %p805 = pneg %p494
        $region66: #{gnn_graphpred2_forward.1} parent=11 // pred_check_branch
          %807 = sbr.rel (%p805) target = $region68
        $region67: #{gnn_graphpred2_forward.1} parent=11 // pred_region
          _
        $region68: #{gnn_graphpred2_forward.1} parent=11 // pred_fallthru
          _
        // Predicated region
        $region69: #{gnn_graphpred2_forward.1} parent=11 // pred_check
          %p808 = pneg %p515
        $region70: #{gnn_graphpred2_forward.1} parent=11 // pred_check_branch
          %810 = sbr.rel (%p808) target = $region72
        $region71: #{gnn_graphpred2_forward.1} parent=11 // pred_region
          _
        $region72: #{gnn_graphpred2_forward.1} parent=11 // pred_fallthru
          _
        // Predicated region
        $region73: #{gnn_graphpred2_forward.1} parent=11 // pred_check
          %p811 = pneg %p536
        $region74: #{gnn_graphpred2_forward.1} parent=11 // pred_check_branch
          %813 = sbr.rel (%p811) target = $region76
        $region75: #{gnn_graphpred2_forward.1} parent=11 // pred_region
          _
        $region76: #{gnn_graphpred2_forward.1} parent=11 // pred_fallthru
          _
        // Predicated region
        $region77: #{gnn_graphpred2_forward.1} parent=11 // pred_check
          %p814 = pneg %p557
        $region78: #{gnn_graphpred2_forward.1} parent=11 // pred_check_branch
          %816 = sbr.rel (%p814) target = $region80
        $region79: #{gnn_graphpred2_forward.1} parent=11 // pred_region
          _
        $region80: #{gnn_graphpred2_forward.1} parent=11 // pred_fallthru
          _
        // Predicated region
        $region81: #{gnn_graphpred2_forward.1} parent=11 // pred_check
          %p817 = pneg %p578
        $region82: #{gnn_graphpred2_forward.1} parent=11 // pred_check_branch
          %819 = sbr.rel (%p817) target = $region84
        $region83: #{gnn_graphpred2_forward.1} parent=11 // pred_region
          _
        $region84: #{gnn_graphpred2_forward.1} parent=11 // pred_fallthru
          _
        // Predicated region
        $region85: #{gnn_graphpred2_forward.1} parent=11 // pred_check
          %p820 = pneg %p599
        $region86: #{gnn_graphpred2_forward.1} parent=11 // pred_check_branch
          %822 = sbr.rel (%p820) target = $region88
        $region87: #{gnn_graphpred2_forward.1} parent=11 // pred_region
          _
        $region88: #{gnn_graphpred2_forward.1} parent=11 // pred_fallthru
          _
        // Predicated region
        $region89: #{gnn_graphpred2_forward.1} parent=11 // pred_check
          %p823 = pneg %p620
        $region90: #{gnn_graphpred2_forward.1} parent=11 // pred_check_branch
          %825 = sbr.rel (%p823) target = $region92
        $region91: #{gnn_graphpred2_forward.1} parent=11 // pred_region
          _
        $region92: #{gnn_graphpred2_forward.1} parent=11 // pred_fallthru
          _
        // Predicated region
        $region93: #{gnn_graphpred2_forward.1} parent=11 // pred_check
          %p826 = pneg %p641
        $region94: #{gnn_graphpred2_forward.1} parent=11 // pred_check_branch
          %828 = sbr.rel (%p826) target = $region96
        $region95: #{gnn_graphpred2_forward.1} parent=11 // pred_region
          _
        $region96: #{gnn_graphpred2_forward.1} parent=11 // pred_fallthru
          _
        // Predicated region
        $region97: #{gnn_graphpred2_forward.1} parent=11 // pred_check
          %p829 = pneg %p662
        $region98: #{gnn_graphpred2_forward.1} parent=11 // pred_check_branch
          %831 = sbr.rel (%p829) target = $region100
        $region99: #{gnn_graphpred2_forward.1} parent=11 // pred_region
          _
        $region100: #{gnn_graphpred2_forward.1} parent=11 // pred_fallthru
          _
        // Predicated region
        $region101: #{gnn_graphpred2_forward.1} parent=11 // pred_check
          %p832 = pneg %p683
        $region102: #{gnn_graphpred2_forward.1} parent=11 // pred_check_branch
          %834 = sbr.rel (%p832) target = $region104
        $region103: #{gnn_graphpred2_forward.1} parent=11 // pred_region
          _
        $region104: #{gnn_graphpred2_forward.1} parent=11 // pred_fallthru
          _
        // Predicated region
        $region105: #{gnn_graphpred2_forward.1} parent=11 // pred_check
          %p835 = pneg %p704
        $region106: #{gnn_graphpred2_forward.1} parent=11 // pred_check_branch
          %837 = sbr.rel (%p835) target = $region108
        $region107: #{gnn_graphpred2_forward.1} parent=11 // pred_region
          _
        $region108: #{gnn_graphpred2_forward.1} parent=11 // pred_fallthru
          _
        // Predicated region
        $region109: #{gnn_graphpred2_forward.1} parent=11 // pred_check
          %p838 = pneg %p725
        $region110: #{gnn_graphpred2_forward.1} parent=11 // pred_check_branch
          %840 = sbr.rel (%p838) target = $region112
        $region111: #{gnn_graphpred2_forward.1} parent=11 // pred_region
          _
        $region112: #{gnn_graphpred2_forward.1} parent=11 // pred_fallthru
          _
      $region12: #{gnn_graphpred2_forward.1} parent=5 // pred_fallthru
        _
      %p841 = scmp.lt.s32.totalorder %s70, 2
      // Predicated region
      $region113: #{gnn_graphpred2_forward.1} parent=5 // pred_check
        %p842 = pneg %p841
      $region114: #{gnn_graphpred2_forward.1} parent=5 // pred_check_branch
        %844 = sbr.rel (%p842) target = $region116
      $region115: #{gnn_graphpred2_forward.1} parent=5 // pred_region
        // Predicated region
        $region117: #{gnn_graphpred2_forward.1} parent=115 // pred_check
          %p845 = pneg %p90
        $region118: #{gnn_graphpred2_forward.1} parent=115 // pred_check_branch
          %847 = sbr.rel (%p845) target = $region120
        $region119: #{gnn_graphpred2_forward.1} parent=115 // pred_region
          %p848 = scmp.lt.s32.totalorder %s70, 1
          %s849 = scalar_select %p848, %s70, 1
          %s850 = smul.addr %s849, 2
          %s851 = smul.addr %s850, 8
          %s852 = scalar_lea.vmem %s1, %s851
        $region120: #{gnn_graphpred2_forward.1} parent=115 // pred_fallthru
          _
        // Predicated region
        $region121: #{gnn_graphpred2_forward.1} parent=115 // pred_check
          %p853 = pneg %p116
        $region122: #{gnn_graphpred2_forward.1} parent=115 // pred_check_branch
          %855 = sbr.rel (%p853) target = $region124
        $region123: #{gnn_graphpred2_forward.1} parent=115 // pred_region
          %p856 = scmp.lt.s32.totalorder %s70, 1
          %s857 = scalar_select %p856, %s70, 1
          %s858 = smul.addr %s857, 4
          %s859 = smul.addr %s858, 8
          %s860 = scalar_lea.vmem %s3, %s859
        $region124: #{gnn_graphpred2_forward.1} parent=115 // pred_fallthru
          _
        // Predicated region
        $region125: #{gnn_graphpred2_forward.1} parent=115 // pred_check
          %p861 = pneg %p142
        $region126: #{gnn_graphpred2_forward.1} parent=115 // pred_check_branch
          %863 = sbr.rel (%p861) target = $region128
        $region127: #{gnn_graphpred2_forward.1} parent=115 // pred_region
          %p864 = scmp.lt.s32.totalorder %s70, 1
          %s865 = scalar_select %p864, %s70, 1
          %s866 = scalar_lea.vmem %s5, %s865
        $region128: #{gnn_graphpred2_forward.1} parent=115 // pred_fallthru
          _
        // Predicated region
        $region129: #{gnn_graphpred2_forward.1} parent=115 // pred_check
          %p867 = pneg %p168
        $region130: #{gnn_graphpred2_forward.1} parent=115 // pred_check_branch
          %869 = sbr.rel (%p867) target = $region132
        $region131: #{gnn_graphpred2_forward.1} parent=115 // pred_region
          %p870 = scmp.lt.s32.totalorder %s70, 1
          %s871 = scalar_select %p870, %s70, 1
          %s872 = smul.addr %s871, 4
          %s873 = smul.addr %s872, 8
          %s874 = scalar_lea.vmem %s7, %s873
        $region132: #{gnn_graphpred2_forward.1} parent=115 // pred_fallthru
          _
        // Predicated region
        $region133: #{gnn_graphpred2_forward.1} parent=115 // pred_check
          %p875 = pneg %p194
        $region134: #{gnn_graphpred2_forward.1} parent=115 // pred_check_branch
          %877 = sbr.rel (%p875) target = $region136
        $region135: #{gnn_graphpred2_forward.1} parent=115 // pred_region
          %p878 = scmp.lt.s32.totalorder %s70, 1
          %s879 = scalar_select %p878, %s70, 1
          %s880 = scalar_lea.vmem %s9, %s879
        $region136: #{gnn_graphpred2_forward.1} parent=115 // pred_fallthru
          _
      $region116: #{gnn_graphpred2_forward.1} parent=5 // pred_fallthru
        _
      %p881 = scmp.le.s32.totalorder 1, %s70
      %p882 = scmp.lt.s32.totalorder %s70, 3
      %p883 = pnand %p881, %p882
      %p884 = pneg %p883
      // Predicated region
      $region137: #{gnn_graphpred2_forward.1} parent=5 // pred_check
        _
      $region138: #{gnn_graphpred2_forward.1} parent=5 // pred_check_branch
        %886 = sbr.rel (%p883) target = $region140
      $region139: #{gnn_graphpred2_forward.1} parent=5 // pred_region
        %s887 = ssub.s32 %s70, 1
        %p888 = scmp.lt.s32.totalorder %s75, 1
        %s889 = scalar_select %p888, %s75, 1
        %s890 = smul.addr %s889, 2
        %s891 = smul.addr %s890, 8
        %s892 = scalar_lea.vmem %s1, %s891
        %p893 = pneg %p96
        %p894 = pneg %p93
        %p895 = scmp.lt.s32.totalorder %s75, 1
        %s896 = scalar_select %p895, %s75, 1
        %s897 = smul.addr %s896, 4
        %s898 = smul.addr %s897, 8
        %s899 = scalar_lea.vmem %s3, %s898
        %p900 = pneg %p122
        %p901 = pneg %p119
        %p902 = scmp.lt.s32.totalorder %s75, 1
        %s903 = scalar_select %p902, %s75, 1
        %s904 = scalar_lea.vmem %s5, %s903
        %p905 = pneg %p148
        %p906 = pneg %p145
        %p907 = scmp.lt.s32.totalorder %s75, 1
        %s908 = scalar_select %p907, %s75, 1
        %s909 = smul.addr %s908, 4
        %s910 = smul.addr %s909, 8
        %s911 = scalar_lea.vmem %s7, %s910
        %p912 = pneg %p174
        %p913 = pneg %p171
        %p914 = scmp.lt.s32.totalorder %s75, 1
        %s915 = scalar_select %p914, %s75, 1
        %s916 = scalar_lea.vmem %s9, %s915
        %p917 = pneg %p200
        %p918 = pneg %p197
        %p919 = pneg %p221
        %p920 = pneg %p218
        %p921 = pneg %p242
        %p922 = pneg %p239
        %p923 = pneg %p263
        %p924 = pneg %p260
        %p925 = pneg %p284
        %p926 = pneg %p281
        %p927 = pneg %p305
        %p928 = pneg %p302
        %p929 = pneg %p326
        %p930 = pneg %p323
        %p931 = pneg %p347
        %p932 = pneg %p344
        %p933 = pneg %p368
        %p934 = pneg %p365
        %p935 = pneg %p389
        %p936 = pneg %p386
        %p937 = pneg %p410
        %p938 = pneg %p407
        %p939 = pneg %p431
        %p940 = pneg %p428
        %p941 = pneg %p452
        %p942 = pneg %p449
        %p943 = pneg %p473
        %p944 = pneg %p470
        %p945 = pneg %p494
        %p946 = pneg %p491
        %p947 = pneg %p515
        %p948 = pneg %p512
        %p949 = pneg %p536
        %p950 = pneg %p533
        %p951 = pneg %p557
        %p952 = pneg %p554
        %p953 = pneg %p578
        %p954 = pneg %p575
        %p955 = pneg %p599
        %p956 = pneg %p596
        %p957 = pneg %p620
        %p958 = pneg %p617
        %p959 = pneg %p641
        %p960 = pneg %p638
        %p961 = pneg %p662
        %p962 = pneg %p659
        %p963 = pneg %p683
        %p964 = pneg %p680
        %p965 = pneg %p704
        %p966 = pneg %p701
        %p967 = pneg %p725
        %p968 = pneg %p722
        %p969 = pneg %p751
        %p970 = pneg %p748
        %s971 = sand.u32 %s738, 1
        %s972 = scalar_lea.sflag [#allocation3], %s971
        %s973 = sand.u32 %s738, 1
        %s974 = scalar_lea.vmem [#allocation2], %s973
        %p975 = scmp.lt.s32.totalorder %s75, 1
        %s976 = scalar_select %p975, %s75, 1
        %s977 = smul.addr %s976, 2
        %s978 = smul.addr %s977, 8
        %s979 = scalar_lea.vmem %s1, %s978
        %p980 = scmp.lt.s32.totalorder %s75, 1
        %s981 = scalar_select %p980, %s75, 1
        %s982 = smul.addr %s981, 4
        %s983 = smul.addr %s982, 8
        %s984 = scalar_lea.vmem %s3, %s983
        %p985 = scmp.lt.s32.totalorder %s75, 1
        %s986 = scalar_select %p985, %s75, 1
        %s987 = scalar_lea.vmem %s5, %s986
        %p988 = scmp.lt.s32.totalorder %s75, 1
        %s989 = scalar_select %p988, %s75, 1
        %s990 = smul.addr %s989, 4
        %s991 = smul.addr %s990, 8
        %s992 = scalar_lea.vmem %s7, %s991
        %p993 = scmp.lt.s32.totalorder %s75, 1
        %s994 = scalar_select %p993, %s75, 1
        %s995 = scalar_lea.vmem %s9, %s994
        %v996 = vld [vmem:[%s979] sm:$0xff]
        %v997 = vld [vmem:[%s979 + $0x8] sm:$0xff]
        %v998 = vld [vmem:[%s984] sm:$0xff]
        %v999 = vld [vmem:[%s984 + $0x8] sm:$0xff]
        %v1000 = vld [vmem:[%s984 + $0x10] sm:$0xff]
        %v1001 = vld [vmem:[%s984 + $0x18] sm:$0xff]
        %v1002 = vld [vmem:[%s987] sm:$0x1]
        %v1003 = vld [vmem:[%s992] sm:$0xff]
        %v1004 = vld [vmem:[%s992 + $0x8] sm:$0xff]
        %v1005 = vld [vmem:[%s992 + $0x10] sm:$0xff]
        %v1006 = vld [vmem:[%s992 + $0x18] sm:$0xff]
        %v1007 = vld [vmem:[%s995] sm:$0x1]
        %v1008 = vlaneseq
        %v1009 = vand.u32 %v1008, 127
        %1010 = vset.pattern.permute.xlu0 0
        %1011 = vperm.xlu0 %1010, %v998
        %v1012 = vpop.permute.xlu0 %1011
        %1013 = vset.pattern.permute.xlu0 0
        %1014 = vperm.xlu0 %1013, %v999
        %v1015 = vpop.permute.xlu0 %1014
        %1016 = vset.pattern.permute.xlu0 0
        %1017 = vperm.xlu0 %1016, %v1000
        %v1018 = vpop.permute.xlu0 %1017
        %1019 = vset.pattern.permute.xlu0 0
        %1020 = vperm.xlu0 %1019, %v1001
        %v1021 = vpop.permute.xlu0 %1020
        %vm1022 = vcmp.eq.s32.totalorder %v1009, %v1012
        %vm1023 = vcmp.eq.s32.totalorder %v1009, %v1015
        %vm1024 = vcmp.eq.s32.totalorder %v1009, %v1018
        %vm1025 = vcmp.eq.s32.totalorder %v1009, %v1021
        %v1026 = vsel %vm1022, 1, 0
        %v1027 = vsel %vm1023, 1, 0
        %v1028 = vsel %vm1024, 1, 0
        %v1029 = vsel %vm1025, 1, 0
        %v1030 = vcvt.s32.f32 %v1026
        %v1031 = vcvt.s32.f32 %v1027
        %v1032 = vcvt.s32.f32 %v1028
        %v1033 = vcvt.s32.f32 %v1029
        %v1034 = vlaneseq
        %v1035 = vshrl.u32 %v1034, 7
        %v1036 = vadd.s32 %v1035, 8
        %v1037 = vperm.slane %v1002, 0
        %vm1038 = vcmp.eq.s32.totalorder %v1035, %v1037
        %vm1039 = vcmp.eq.s32.totalorder %v1036, %v1037
        %v1040 = vsel %vm1038, 1, 0
        %v1041 = vsel %vm1039, 1, 0
        %v1042 = vcvt.s32.f32 %v1040
        %v1043 = vcvt.s32.f32 %v1041
        %vm1044 = vcmask 261120
        %v1046 = vsel %vm1044, %v1042, 0
        %v1049 = vsel %vm1044, %v1043, 0
        %1051 = vmatpush.msra.mxu0 0.0
        %1052 = vmatpush.msra.mxu0 0.0
        %1053 = vmatpush.msra.mxu0 0.0
        %1054 = vmatpush.msra.mxu0 0.0
        %1055 = vmatpush.msra.mxu0 0.0
        %1056 = vmatpush.msra.mxu0 0.0
        %1057 = vmatpush.msra.mxu0 0.0
        %1058 = vmatpush.msra.mxu0 0.0
        %1059 = vmatpush.msra.mxu0 0.0
        %1060 = vmatpush.msra.mxu0 0.0
        %1061 = vmatpush.msra.mxu0 0.0
        %1062 = vmatpush.msra.mxu0 0.0
        %1063 = vmatpush.msra.mxu0 %v1033
        %1064 = vmatpush.msra.mxu0 %v1032
        %1065 = vmatpush.msra.mxu0 %v1031
        %1066 = vmatpush.msra.mxu0 %v1030
        %1067 = vmatmul.f32.gmra.mxu0 %v1046
        %v1068 = vpop.f32.mrf.mxu0
        %v1069 = vadd.f32 0.0, %v1068
        %1070 = vmatmul.f32.gmra.mxu0 %v1049
        %v1071 = vpop.f32.mrf.mxu0
        %v1072 = vadd.f32 0.0, %v1071
        %1073 = vdwg.mxu0
        %1074 = vmatpush.msra.mxu0 0.0
        %1075 = vmatpush.msra.mxu0 0.0
        %1076 = vmatpush.msra.mxu0 0.0
        %1077 = vmatpush.msra.mxu0 0.0
        %1078 = vmatpush.msra.mxu0 0.0
        %1079 = vmatpush.msra.mxu0 0.0
        %1080 = vmatpush.msra.mxu0 0.0
        %1081 = vmatpush.msra.mxu0 0.0
        %1082 = vmatpush.msra.mxu0 0.0
        %1083 = vmatpush.msra.mxu0 0.0
        %1084 = vmatpush.msra.mxu0 0.0
        %1085 = vmatpush.msra.mxu0 0.0
        %1086 = vmatpush.msra.mxu0 %v1006
        %1087 = vmatpush.msra.mxu0 %v1005
        %1088 = vmatpush.msra.mxu0 %v1004
        %1089 = vmatpush.msra.mxu0 %v1003
        %1090 = vmatmul.f32.gmra.mxu0 %v1046
        %v1091 = vpop.f32.mrf.mxu0
        %v1092 = vadd.f32 0.0, %v1091
        %1093 = vmatmul.f32.gmra.mxu0 %v1049
        %v1094 = vpop.f32.mrf.mxu0
        %v1095 = vadd.f32 0.0, %v1094
        %1096 = vdwg.mxu0
        %v1097 = vsel %vm1044, %v1042, 0.0
        %1098 = vadd.xlane.f32.xlu0 %v1097
        %v1099 = vpop.xlane.xlu0 %1098
        %v1100 = vsel %vm1044, %v1043, 0.0
        %1101 = vadd.xlane.f32.xlu0 %v1100
        %v1102 = vpop.xlane.xlu0 %1101
        %v1103 = vld [vmem:[%s11] sm:$0xff]
        %v1104 = vld [vmem:[%s11 + $0x8] sm:$0xff]
        %v1105 = vld [vmem:[%s11 + $0x10] sm:$0x1f]
        %v1106 = vld [vmem:[%s13] sm:$0x1]
        %v1108 = vperm.slane %v1106, 0
        %vm1110 = vcmask 171008
        %v1112 = vsel %vm1110, %v996, 0
        %v1115 = vsel %vm1110, %v997, 0
        %vm1117 = vcmask 1044480
        %v1119 = vsel %vm1117, %v1105, 0
        %1121 = vmatpush.msra.mxu0 0.0
        %1122 = vmatpush.msra.mxu0 0.0
        %1123 = vmatpush.msra.mxu0 0.0
        %1124 = vmatpush.msra.mxu0 0.0
        %1125 = vmatpush.msra.mxu0 0.0
        %1126 = vmatpush.msra.mxu0 0.0
        %1127 = vmatpush.msra.mxu0 0.0
        %1128 = vmatpush.msra.mxu0 0.0
        %1129 = vmatpush.msra.mxu0 0.0
        %1130 = vmatpush.msra.mxu0 0.0
        %1131 = vmatpush.msra.mxu0 0.0
        %1132 = vmatpush.msra.mxu0 0.0
        %1133 = vmatpush.msra.mxu0 0.0
        %1134 = vmatpush.msra.mxu0 %v1119
        %1135 = vmatpush.msra.mxu0 %v1104
        %1136 = vmatpush.msra.mxu0 %v1103
        %1137 = vmatmul.f32.gmra.mxu0 %v1112
        %v1138 = vpop.f32.mrf.mxu0
        %v1139 = vadd.f32 %v1108, %v1138
        %1140 = vmatmul.f32.gmra.mxu0 %v1115
        %v1141 = vpop.f32.mrf.mxu0
        %v1142 = vadd.f32 %v1108, %v1141
        %1143 = vdwg.mxu0
        %v1144 = vld [vmem:[%s15] sm:$0x1]
        %v1145 = vld [vmem:[%s17] sm:$0x1]
        %v1146 = vld [vmem:[%s19] sm:$0xff]
        %v1147 = vld [vmem:[%s19 + $0x8] sm:$0xff]
        %v1148 = vld [vmem:[%s19 + $0x10] sm:$0xff]
        %v1149 = vld [vmem:[%s19 + $0x18] sm:$0xff]
        %v1150 = vld [vmem:[%s21] sm:$0xff]
        %v1151 = vld [vmem:[%s21 + $0x8] sm:$0xff]
        %v1152 = vld [vmem:[%s21 + $0x10] sm:$0xff]
        %v1153 = vld [vmem:[%s21 + $0x18] sm:$0xff]
        %v1154 = vld [vmem:[%s23] sm:$0x1]
        %v1155 = vld [vmem:[%s25] sm:$0x1]
        %v1156 = vld [vmem:[%s27] sm:$0x1]
        %v1157 = vld [vmem:[%s29] sm:$0xff]
        %v1158 = vld [vmem:[%s29 + $0x8] sm:$0xff]
        %v1159 = vld [vmem:[%s29 + $0x10] sm:$0xff]
        %v1160 = vld [vmem:[%s29 + $0x18] sm:$0xff]
        %v1161 = vld [vmem:[%s29 + $0x20] sm:$0xff]
        %v1162 = vld [vmem:[%s29 + $0x28] sm:$0xff]
        %v1163 = vld [vmem:[%s29 + $0x30] sm:$0xff]
        %v1164 = vld [vmem:[%s29 + $0x38] sm:$0xff]
        %v1165 = vld [vmem:[%s31] sm:$0x1]
        %vm1166 = vcmask 130048
        %v1168 = vsel %vm1166, %v1069, 0
        %v1171 = vsel %vm1166, %v1072, 0
        %1173 = vmatpush.msra.mxu0 0.0
        %1174 = vmatpush.msra.mxu0 0.0
        %1175 = vmatpush.msra.mxu0 0.0
        %1176 = vmatpush.msra.mxu0 0.0
        %1177 = vmatpush.msra.mxu0 0.0
        %1178 = vmatpush.msra.mxu0 0.0
        %1179 = vmatpush.msra.mxu0 0.0
        %1180 = vmatpush.msra.mxu0 0.0
        %1181 = vmatpush.msra.mxu0 0.0
        %1182 = vmatpush.msra.mxu0 0.0
        %1183 = vmatpush.msra.mxu0 0.0
        %1184 = vmatpush.msra.mxu0 0.0
        %1185 = vmatpush.msra.mxu0 0.0
        %1186 = vmatpush.msra.mxu0 0.0
        %1187 = vmatpush.msra.mxu0 %v1142
        %1188 = vmatpush.msra.mxu0 %v1139
        %1189 = vmatmul.f32.gmra.mxu0 %v1168
        %v1190 = vpop.f32.mrf.mxu0
        %v1191 = vadd.f32 0.0, %v1190
        %1192 = vmatmul.f32.gmra.mxu0 %v1171
        %v1193 = vpop.f32.mrf.mxu0
        %v1194 = vadd.f32 0.0, %v1193
        %1195 = vdwg.mxu0
        %1197 = vset.pattern.permute.xlu0 0
        %1198 = vperm.xlu0 %1197, %v1092
        %v1199 = vpop.permute.xlu0 %1198
        %1202 = vset.pattern.permute.xlu0 0
        %1203 = vperm.xlu0 %1202, %v1095
        %v1204 = vpop.permute.xlu0 %1203
        %v1207 = vperm.slane %v1144, 0
        %v1209 = vmul.f32 %v1199, %v1207
        %v1210 = vmul.f32 %v1204, %v1207
        %v1212 = vperm.slane %v1145, 0
        %v1214 = vmul.f32 %v1099, %v1212
        %v1215 = vmul.f32 %v1102, %v1212
        %v1216 = vadd.f32 %v1209, %v1214
        %v1217 = vadd.f32 %v1210, %v1215
        %v1219 = vsel %vm1044, %v1216, 0
        %v1222 = vsel %vm1044, %v1217, 0
        %1224 = vmatpush.msra.mxu0 0.0
        %1225 = vmatpush.msra.mxu0 0.0
        %1226 = vmatpush.msra.mxu0 0.0
        %1227 = vmatpush.msra.mxu0 0.0
        %1228 = vmatpush.msra.mxu0 0.0
        %1229 = vmatpush.msra.mxu0 0.0
        %1230 = vmatpush.msra.mxu0 0.0
        %1231 = vmatpush.msra.mxu0 0.0
        %1232 = vmatpush.msra.mxu0 0.0
        %1233 = vmatpush.msra.mxu0 0.0
        %1234 = vmatpush.msra.mxu0 0.0
        %1235 = vmatpush.msra.mxu0 0.0
        %1236 = vmatpush.msra.mxu0 %v1153
        %1237 = vmatpush.msra.mxu0 %v1152
        %1238 = vmatpush.msra.mxu0 %v1151
        %1239 = vmatpush.msra.mxu0 %v1150
        %1240 = vmatmul.f32.gmra.mxu0 %v1219
        %v1241 = vpop.f32.mrf.mxu0
        %v1242 = vadd.f32 0.0, %v1241
        %1243 = vmatmul.f32.gmra.mxu0 %v1222
        %v1244 = vpop.f32.mrf.mxu0
        %v1245 = vadd.f32 0.0, %v1244
        %1246 = vdwg.mxu0
        %v1248 = vsel %vm1044, %v1191, 0
        %v1251 = vsel %vm1044, %v1194, 0
        %1253 = vmatpush.msra.mxu0 0.0
        %1254 = vmatpush.msra.mxu0 0.0
        %1255 = vmatpush.msra.mxu0 0.0
        %1256 = vmatpush.msra.mxu0 0.0
        %1257 = vmatpush.msra.mxu0 0.0
        %1258 = vmatpush.msra.mxu0 0.0
        %1259 = vmatpush.msra.mxu0 0.0
        %1260 = vmatpush.msra.mxu0 0.0
        %1261 = vmatpush.msra.mxu0 0.0
        %1262 = vmatpush.msra.mxu0 0.0
        %1263 = vmatpush.msra.mxu0 0.0
        %1264 = vmatpush.msra.mxu0 0.0
        %1265 = vmatpush.msra.mxu0 %v1149
        %1266 = vmatpush.msra.mxu0 %v1148
        %1267 = vmatpush.msra.mxu0 %v1147
        %1268 = vmatpush.msra.mxu0 %v1146
        %1269 = vmatmul.f32.gmra.mxu0 %v1248
        %v1270 = vpop.f32.mrf.mxu0
        %v1271 = vadd.f32 %v1242, %v1270
        %1272 = vmatmul.f32.gmra.mxu0 %v1251
        %v1273 = vpop.f32.mrf.mxu0
        %v1274 = vadd.f32 %v1245, %v1273
        %1275 = vdwg.mxu0
        %v1277 = vperm.slane %v1154, 0
        %v1279 = vadd.f32 %v1271, %v1277
        %v1280 = vadd.f32 %v1274, %v1277
        %vm1281 = vcmask 523264
        %v1282 = vsel %vm1281, %v1279, 0.0
        %v1283 = vsel %vm1281, %v1280, 0.0
        %v1284 = vadd.f32 %v1282, %v1283
        %v1285 = vrot.slane %v1284, 4
        %v1286 = vadd.f32 %v1284, %v1285
        %v1287 = vrot.slane %v1286, 2
        %v1288 = vadd.f32 %v1286, %v1287
        %v1289 = vrot.slane %v1288, 1
        %v1290 = vadd.f32 %v1288, %v1289
        %v1291 = vrcp.pop 16.0
        %v1292 = vmul.f32 16.0, %v1291
        %v1293 = vsub.f32 1.0, %v1292
        %v1294 = vmul.f32 %v1291, %v1293
        %v1295 = vadd.f32 %v1291, %v1294
        %vm1296 = vweird.f32 %v1291
        %v1297 = vsel %vm1296, %v1291, %v1295
        %v1298 = vmul.f32 %v1290, %v1297
        %v1299 = vsub.f32 %v1279, %v1298
        %v1300 = vsub.f32 %v1280, %v1298
        %v1301 = vmul.f32 %v1299, %v1299
        %v1302 = vmul.f32 %v1300, %v1300
        %v1303 = vsel %vm1281, %v1301, 0.0
        %v1304 = vsel %vm1281, %v1302, 0.0
        %v1305 = vadd.f32 %v1303, %v1304
        %v1306 = vrot.slane %v1305, 4
        %v1307 = vadd.f32 %v1305, %v1306
        %v1308 = vrot.slane %v1307, 2
        %v1309 = vadd.f32 %v1307, %v1308
        %v1310 = vrot.slane %v1309, 1
        %v1311 = vadd.f32 %v1309, %v1310
        %v1312 = vmul.f32 %v1311, %v1297
        %v1313 = vadd.f32 %v1312, 1e-05
        %v1314 = vrsqrt.pop %v1313
        %v1315 = vmul.f32 %v1314, %v1313
        %v1316 = vmul.f32 %v1315, %v1314
        %v1317 = vmul.f32 0.5, %v1316
        %v1318 = vsub.f32 1.5, %v1317
        %v1319 = vmul.f32 %v1314, %v1318
        %vm1320 = vweird.f32 %v1313
        %vm1321 = vweird.f32 %v1314
        %vm1322 = vmor %vm1320, %vm1321
        %v1323 = vsel %vm1322, %v1314, %v1319
        %v1324 = vmul.f32 %v1299, %v1323
        %v1325 = vmul.f32 %v1300, %v1323
        %v1327 = vperm.slane %v1155, 0
        %v1329 = vmul.f32 %v1324, %v1327
        %v1330 = vmul.f32 %v1325, %v1327
        %v1332 = vperm.slane %v1156, 0
        %v1334 = vadd.f32 %v1329, %v1332
        %v1335 = vadd.f32 %v1330, %v1332
        %v1336 = vmax.f32 %v1334, 0.0
        %v1337 = vmax.f32 %v1335, 0.0
        %v1339 = vperm.slane %v1165, 0
        %v1342 = vsel %vm1281, %v1336, 0
        %v1345 = vsel %vm1281, %v1337, 0
        %1347 = vmatpush.msra.mxu0 0.0
        %1348 = vmatpush.msra.mxu0 0.0
        %1349 = vmatpush.msra.mxu0 0.0
        %1350 = vmatpush.msra.mxu0 0.0
        %1351 = vmatpush.msra.mxu0 0.0
        %1352 = vmatpush.msra.mxu0 0.0
        %1353 = vmatpush.msra.mxu0 0.0
        %1354 = vmatpush.msra.mxu0 0.0
        %1355 = vmatpush.msra.mxu0 %v1164
        %1356 = vmatpush.msra.mxu0 %v1163
        %1357 = vmatpush.msra.mxu0 %v1162
        %1358 = vmatpush.msra.mxu0 %v1161
        %1359 = vmatpush.msra.mxu0 %v1160
        %1360 = vmatpush.msra.mxu0 %v1159
        %1361 = vmatpush.msra.mxu0 %v1158
        %1362 = vmatpush.msra.mxu0 %v1157
        %1363 = vmatmul.f32.gmra.mxu0 %v1342
        %v1364 = vpop.f32.mrf.mxu0
        %v1365 = vadd.f32 %v1339, %v1364
        %1366 = vmatmul.f32.gmra.mxu0 %v1345
        %v1367 = vpop.f32.mrf.mxu0
        %v1368 = vadd.f32 %v1339, %v1367
        %1369 = vdwg.mxu0
        %v1370 = vmax.f32 %v1365, 0.0
        %v1371 = vmax.f32 %v1368, 0.0
        %v1372 = vld [vmem:[%s33] sm:$0x1]
        %v1373 = vld [vmem:[%s35] sm:$0x1]
        %v1374 = vld [vmem:[%s37] sm:$0xff]
        %v1375 = vld [vmem:[%s37 + $0x8] sm:$0xff]
        %v1376 = vld [vmem:[%s37 + $0x10] sm:$0xff]
        %v1377 = vld [vmem:[%s37 + $0x18] sm:$0xff]
        %v1378 = vld [vmem:[%s39] sm:$0xff]
        %v1379 = vld [vmem:[%s39 + $0x8] sm:$0xff]
        %v1380 = vld [vmem:[%s39 + $0x10] sm:$0xff]
        %v1381 = vld [vmem:[%s39 + $0x18] sm:$0xff]
        %v1382 = vld [vmem:[%s41] sm:$0x1]
        %v1383 = vld [vmem:[%s43] sm:$0x1]
        %v1384 = vld [vmem:[%s45] sm:$0x1]
        %v1385 = vld [vmem:[%s47] sm:$0xff]
        %v1386 = vld [vmem:[%s47 + $0x8] sm:$0xff]
        %v1387 = vld [vmem:[%s47 + $0x10] sm:$0xff]
        %v1388 = vld [vmem:[%s47 + $0x18] sm:$0xff]
        %v1389 = vld [vmem:[%s47 + $0x20] sm:$0xff]
        %v1390 = vld [vmem:[%s47 + $0x28] sm:$0xff]
        %v1391 = vld [vmem:[%s47 + $0x30] sm:$0xff]
        %v1392 = vld [vmem:[%s47 + $0x38] sm:$0xff]
        %v1393 = vld [vmem:[%s49] sm:$0x1]
        %1394 = vmatpush.msra.mxu0 0.0
        %1395 = vmatpush.msra.mxu0 0.0
        %1396 = vmatpush.msra.mxu0 0.0
        %1397 = vmatpush.msra.mxu0 0.0
        %1398 = vmatpush.msra.mxu0 0.0
        %1399 = vmatpush.msra.mxu0 0.0
        %1400 = vmatpush.msra.mxu0 0.0
        %1401 = vmatpush.msra.mxu0 0.0
        %1402 = vmatpush.msra.mxu0 0.0
        %1403 = vmatpush.msra.mxu0 0.0
        %1404 = vmatpush.msra.mxu0 0.0
        %1405 = vmatpush.msra.mxu0 0.0
        %1406 = vmatpush.msra.mxu0 0.0
        %1407 = vmatpush.msra.mxu0 0.0
        %1408 = vmatpush.msra.mxu0 %v1371
        %1409 = vmatpush.msra.mxu0 %v1370
        %1410 = vmatmul.f32.gmra.mxu0 %v1168
        %v1411 = vpop.f32.mrf.mxu0
        %v1412 = vadd.f32 0.0, %v1411
        %1413 = vmatmul.f32.gmra.mxu0 %v1171
        %v1414 = vpop.f32.mrf.mxu0
        %v1415 = vadd.f32 0.0, %v1414
        %1416 = vdwg.mxu0
        %v1418 = vperm.slane %v1372, 0
        %v1420 = vmul.f32 %v1199, %v1418
        %v1421 = vmul.f32 %v1204, %v1418
        %v1423 = vperm.slane %v1373, 0
        %v1425 = vmul.f32 %v1099, %v1423
        %v1426 = vmul.f32 %v1102, %v1423
        %v1427 = vadd.f32 %v1420, %v1425
        %v1428 = vadd.f32 %v1421, %v1426
        %v1430 = vsel %vm1044, %v1427, 0
        %v1433 = vsel %vm1044, %v1428, 0
        %1435 = vmatpush.msra.mxu0 0.0
        %1436 = vmatpush.msra.mxu0 0.0
        %1437 = vmatpush.msra.mxu0 0.0
        %1438 = vmatpush.msra.mxu0 0.0
        %1439 = vmatpush.msra.mxu0 0.0
        %1440 = vmatpush.msra.mxu0 0.0
        %1441 = vmatpush.msra.mxu0 0.0
        %1442 = vmatpush.msra.mxu0 0.0
        %1443 = vmatpush.msra.mxu0 0.0
        %1444 = vmatpush.msra.mxu0 0.0
        %1445 = vmatpush.msra.mxu0 0.0
        %1446 = vmatpush.msra.mxu0 0.0
        %1447 = vmatpush.msra.mxu0 %v1381
        %1448 = vmatpush.msra.mxu0 %v1380
        %1449 = vmatpush.msra.mxu0 %v1379
        %1450 = vmatpush.msra.mxu0 %v1378
        %1451 = vmatmul.f32.gmra.mxu0 %v1430
        %v1452 = vpop.f32.mrf.mxu0
        %v1453 = vadd.f32 0.0, %v1452
        %1454 = vmatmul.f32.gmra.mxu0 %v1433
        %v1455 = vpop.f32.mrf.mxu0
        %v1456 = vadd.f32 0.0, %v1455
        %1457 = vdwg.mxu0
        %v1459 = vsel %vm1044, %v1412, 0
        %v1462 = vsel %vm1044, %v1415, 0
        %1464 = vmatpush.msra.mxu0 0.0
        %1465 = vmatpush.msra.mxu0 0.0
        %1466 = vmatpush.msra.mxu0 0.0
        %1467 = vmatpush.msra.mxu0 0.0
        %1468 = vmatpush.msra.mxu0 0.0
        %1469 = vmatpush.msra.mxu0 0.0
        %1470 = vmatpush.msra.mxu0 0.0
        %1471 = vmatpush.msra.mxu0 0.0
        %1472 = vmatpush.msra.mxu0 0.0
        %1473 = vmatpush.msra.mxu0 0.0
        %1474 = vmatpush.msra.mxu0 0.0
        %1475 = vmatpush.msra.mxu0 0.0
        %1476 = vmatpush.msra.mxu0 %v1377
        %1477 = vmatpush.msra.mxu0 %v1376
        %1478 = vmatpush.msra.mxu0 %v1375
        %1479 = vmatpush.msra.mxu0 %v1374
        %1480 = vmatmul.f32.gmra.mxu0 %v1459
        %v1481 = vpop.f32.mrf.mxu0
        %v1482 = vadd.f32 %v1453, %v1481
        %1483 = vmatmul.f32.gmra.mxu0 %v1462
        %v1484 = vpop.f32.mrf.mxu0
        %v1485 = vadd.f32 %v1456, %v1484
        %1486 = vdwg.mxu0
        %v1488 = vperm.slane %v1382, 0
        %v1490 = vadd.f32 %v1482, %v1488
        %v1491 = vadd.f32 %v1485, %v1488
        %v1492 = vsel %vm1281, %v1490, 0.0
        %v1493 = vsel %vm1281, %v1491, 0.0
        %v1494 = vadd.f32 %v1492, %v1493
        %v1495 = vrot.slane %v1494, 4
        %v1496 = vadd.f32 %v1494, %v1495
        %v1497 = vrot.slane %v1496, 2
        %v1498 = vadd.f32 %v1496, %v1497
        %v1499 = vrot.slane %v1498, 1
        %v1500 = vadd.f32 %v1498, %v1499
        %v1501 = vmul.f32 %v1500, %v1297
        %v1502 = vsub.f32 %v1490, %v1501
        %v1503 = vsub.f32 %v1491, %v1501
        %v1504 = vmul.f32 %v1502, %v1502
        %v1505 = vmul.f32 %v1503, %v1503
        %v1506 = vsel %vm1281, %v1504, 0.0
        %v1507 = vsel %vm1281, %v1505, 0.0
        %v1508 = vadd.f32 %v1506, %v1507
        %v1509 = vrot.slane %v1508, 4
        %v1510 = vadd.f32 %v1508, %v1509
        %v1511 = vrot.slane %v1510, 2
        %v1512 = vadd.f32 %v1510, %v1511
        %v1513 = vrot.slane %v1512, 1
        %v1514 = vadd.f32 %v1512, %v1513
        %v1515 = vmul.f32 %v1514, %v1297
        %v1516 = vadd.f32 %v1515, 1e-05
        %v1517 = vrsqrt.pop %v1516
        %v1518 = vmul.f32 %v1517, %v1516
        %v1519 = vmul.f32 %v1518, %v1517
        %v1520 = vmul.f32 0.5, %v1519
        %v1521 = vsub.f32 1.5, %v1520
        %v1522 = vmul.f32 %v1517, %v1521
        %vm1523 = vweird.f32 %v1516
        %vm1524 = vweird.f32 %v1517
        %vm1525 = vmor %vm1523, %vm1524
        %v1526 = vsel %vm1525, %v1517, %v1522
        %v1527 = vmul.f32 %v1502, %v1526
        %v1528 = vmul.f32 %v1503, %v1526
        %v1530 = vperm.slane %v1383, 0
        %v1532 = vmul.f32 %v1527, %v1530
        %v1533 = vmul.f32 %v1528, %v1530
        %v1535 = vperm.slane %v1384, 0
        %v1537 = vadd.f32 %v1532, %v1535
        %v1538 = vadd.f32 %v1533, %v1535
        %v1539 = vmax.f32 %v1537, 0.0
        %v1540 = vmax.f32 %v1538, 0.0
        %v1542 = vperm.slane %v1393, 0
        %v1545 = vsel %vm1281, %v1539, 0
        %v1548 = vsel %vm1281, %v1540, 0
        %1550 = vmatpush.msra.mxu0 0.0
        %1551 = vmatpush.msra.mxu0 0.0
        %1552 = vmatpush.msra.mxu0 0.0
        %1553 = vmatpush.msra.mxu0 0.0
        %1554 = vmatpush.msra.mxu0 0.0
        %1555 = vmatpush.msra.mxu0 0.0
        %1556 = vmatpush.msra.mxu0 0.0
        %1557 = vmatpush.msra.mxu0 0.0
        %1558 = vmatpush.msra.mxu0 %v1392
        %1559 = vmatpush.msra.mxu0 %v1391
        %1560 = vmatpush.msra.mxu0 %v1390
        %1561 = vmatpush.msra.mxu0 %v1389
        %1562 = vmatpush.msra.mxu0 %v1388
        %1563 = vmatpush.msra.mxu0 %v1387
        %1564 = vmatpush.msra.mxu0 %v1386
        %1565 = vmatpush.msra.mxu0 %v1385
        %1566 = vmatmul.f32.gmra.mxu0 %v1545
        %v1567 = vpop.f32.mrf.mxu0
        %v1568 = vadd.f32 %v1542, %v1567
        %1569 = vmatmul.f32.gmra.mxu0 %v1548
        %v1570 = vpop.f32.mrf.mxu0
        %v1571 = vadd.f32 %v1542, %v1570
        %1572 = vdwg.mxu0
        %v1573 = vld [vmem:[%s51] sm:$0xff]
        %v1574 = vld [vmem:[%s53] sm:$0x1]
        %v1575 = vld [vmem:[%s55] sm:$0xff]
        %v1576 = vld [vmem:[%s55 + $0x8] sm:$0xff]
        %v1577 = vld [vmem:[%s55 + $0x10] sm:$0xff]
        %v1578 = vld [vmem:[%s55 + $0x18] sm:$0xff]
        %v1579 = vld [vmem:[%s57] sm:$0xff]
        %v1580 = vld [vmem:[%s57 + $0x8] sm:$0xff]
        %v1581 = vld [vmem:[%s57 + $0x10] sm:$0xff]
        %v1582 = vld [vmem:[%s57 + $0x18] sm:$0xff]
        %v1583 = vld [vmem:[%s59] sm:$0x1]
        %v1584 = vsel %vm1044, %v1568, 0.0
        %v1585 = vsel %vm1044, %v1571, 0.0
        %v1586 = vadd.f32 %v1584, %v1585
        %v1587 = vrot.slane %v1586, 4
        %v1588 = vadd.f32 %v1586, %v1587
        %v1589 = vrot.slane %v1588, 2
        %v1590 = vadd.f32 %v1588, %v1589
        %v1591 = vrot.slane %v1590, 1
        %v1592 = vadd.f32 %v1590, %v1591
        %v1593 = vmul.f32 %v1592, %v1297
        %vm1594 = vcmask 64512
        %v1596 = vsel %vm1594, %v1007, 0
        %1598 = vmatpush.msra.mxu0 0.0
        %1599 = vmatpush.msra.mxu0 0.0
        %1600 = vmatpush.msra.mxu0 0.0
        %1601 = vmatpush.msra.mxu0 0.0
        %1602 = vmatpush.msra.mxu0 0.0
        %1603 = vmatpush.msra.mxu0 0.0
        %1604 = vmatpush.msra.mxu0 0.0
        %1605 = vmatpush.msra.mxu0 0.0
        %1606 = vmatpush.msra.mxu0 0.0
        %1607 = vmatpush.msra.mxu0 0.0
        %1608 = vmatpush.msra.mxu0 0.0
        %1609 = vmatpush.msra.mxu0 0.0
        %1610 = vmatpush.msra.mxu0 0.0
        %1611 = vmatpush.msra.mxu0 0.0
        %1612 = vmatpush.msra.mxu0 0.0
        %1613 = vmatpush.msra.mxu0 %v1573
        %1614 = vmatmul.f32.gmra.mxu0 %v1596
        %v1615 = vpop.f32.mrf.mxu0
        %v1616 = vadd.f32 %v1574, %v1615
        %1617 = vdwg.mxu0
        %v1619 = vsel %vm1044, %v1616, 0
        %1621 = vmatpush.msra.mxu0 0.0
        %1622 = vmatpush.msra.mxu0 0.0
        %1623 = vmatpush.msra.mxu0 0.0
        %1624 = vmatpush.msra.mxu0 0.0
        %1625 = vmatpush.msra.mxu0 0.0
        %1626 = vmatpush.msra.mxu0 0.0
        %1627 = vmatpush.msra.mxu0 0.0
        %1628 = vmatpush.msra.mxu0 0.0
        %1629 = vmatpush.msra.mxu0 0.0
        %1630 = vmatpush.msra.mxu0 0.0
        %1631 = vmatpush.msra.mxu0 0.0
        %1632 = vmatpush.msra.mxu0 0.0
        %1633 = vmatpush.msra.mxu0 %v1582
        %1634 = vmatpush.msra.mxu0 %v1581
        %1635 = vmatpush.msra.mxu0 %v1580
        %1636 = vmatpush.msra.mxu0 %v1579
        %1637 = vmatmul.f32.gmra.mxu0 %v1619
        %v1638 = vpop.f32.mrf.mxu0
        %v1639 = vadd.f32 0.0, %v1638
        %1640 = vdwg.mxu0
        %v1642 = vsel %vm1044, %v1593, 0
        %1644 = vmatpush.msra.mxu0 0.0
        %1645 = vmatpush.msra.mxu0 0.0
        %1646 = vmatpush.msra.mxu0 0.0
        %1647 = vmatpush.msra.mxu0 0.0
        %1648 = vmatpush.msra.mxu0 0.0
        %1649 = vmatpush.msra.mxu0 0.0
        %1650 = vmatpush.msra.mxu0 0.0
        %1651 = vmatpush.msra.mxu0 0.0
        %1652 = vmatpush.msra.mxu0 0.0
        %1653 = vmatpush.msra.mxu0 0.0
        %1654 = vmatpush.msra.mxu0 0.0
        %1655 = vmatpush.msra.mxu0 0.0
        %1656 = vmatpush.msra.mxu0 %v1578
        %1657 = vmatpush.msra.mxu0 %v1577
        %1658 = vmatpush.msra.mxu0 %v1576
        %1659 = vmatpush.msra.mxu0 %v1575
        %1660 = vmatmul.f32.gmra.mxu0 %v1642
        %v1661 = vpop.f32.mrf.mxu0
        %v1662 = vadd.f32 %v1639, %v1661
        %1663 = vdwg.mxu0
        %v1664 = vadd.f32 %v1662, %v1583
        %1665 = vst [vmem:[%s974] sm:$0x1] %v1664
        %s1666 = sand.u32 %s738, 1
        %s1667 = scalar_lea.sflag [#allocation3], %s1666
        %s1668 = sand.u32 %s738, 1
        %s1669 = scalar_lea.vmem [#allocation2], %s1668
        // Predicated region
        $region141: #{gnn_graphpred2_forward.1} parent=139 // pred_check
          %p1670 = pneg %p748
        $region142: #{gnn_graphpred2_forward.1} parent=139 // pred_check_branch
          %1672 = sbr.rel (%p1670) target = $region144
        $region143: #{gnn_graphpred2_forward.1} parent=139 // pred_region
          %1674 = vsyncadd %s1667, 0
          %s1675 = scalar_lea.hbm %s61, %s75
          %s1677 = sshll.u32 %s1669, 4
          %s1678 = int_to_ptr.vmem [resolvable:$true] %s1677
          %s1679 = sshll.u32 %s1675, 4
          %s1680 = int_to_ptr.hbm [resolvable:$true] %s1679
          %1682 = dma.vmem_to_hbm [thread:$0]  %s1678, 16, %s1680, %s1667
        $region144: #{gnn_graphpred2_forward.1} parent=139 // pred_fallthru
          _
      $region140: #{gnn_graphpred2_forward.1} parent=5 // pred_fallthru
        _
      %p1683 = scmp.le.s32.totalorder 2, %s70
      // Predicated region
      $region145: #{gnn_graphpred2_forward.1} parent=5 // pred_check
        %p1684 = pneg %p1683
      $region146: #{gnn_graphpred2_forward.1} parent=5 // pred_check_branch
        %1686 = sbr.rel (%p1684) target = $region148
      $region147: #{gnn_graphpred2_forward.1} parent=5 // pred_region
        %s1687 = ssub.s32 %s70, 2
        // Predicated region
        $region149: #{gnn_graphpred2_forward.1} parent=147 // pred_check
          %p1688 = pneg %p754
        $region150: #{gnn_graphpred2_forward.1} parent=147 // pred_check_branch
          %1690 = sbr.rel (%p1688) target = $region152
        $region151: #{gnn_graphpred2_forward.1} parent=147 // pred_region
          %s1691 = sand.u32 %s739, 1
          %s1692 = scalar_lea.sflag [#allocation3], %s1691
          %s1693 = sand.u32 %s739, 1
          %s1694 = scalar_lea.vmem [#allocation2], %s1693
          %1696 = dma.done %s1692, 16
        $region152: #{gnn_graphpred2_forward.1} parent=147 // pred_fallthru
          _
      $region148: #{gnn_graphpred2_forward.1} parent=5 // pred_fallthru
        _
    $region6: #{gnn_graphpred2_forward.1} parent=1 // loop_footer
      %s74 = sadd.s32 1, %s70
    $region7: #{gnn_graphpred2_forward.1} parent=1 // loop_footer_branch
      %69 = sbr.rel target = $region3
    $region8: #{gnn_graphpred2_forward.1} parent=1 // loop_exit
      _
    %1697 = vsyncpa [#allocation3], 1
    %s1698 = scalar_lea.sflag [#allocation3], 1
    %1699 = vsyncpa %s1698, 1

</llo_original>
